<compile_context>
chip_gen: v7x
topology: tpu7x:2x2x1
jax: 0.10.0
libtpu: 0.0.40
codegen_flags: <defaults>
</compile_context>

<pallas_src>
import functools

import jax
import jax.numpy as jnp
from jax.experimental import pallas as pl
from jax.experimental.pallas import tpu as pltpu


def _sublane_granularity(dtype):
    itemsize = jnp.dtype(dtype).itemsize
    return {4: 8, 2: 16, 1: 32}.get(itemsize, 8)


def _pick_group(M, W):
    """Largest divisor of M with g <= ceil(128 / W): packs g H-rows into lanes."""
    target = max(1, -(-128 // W))
    g = 1
    for d in range(1, target + 1):
        if M % d == 0:
            g = d
    return g


def _pick_row_tile(n, gran, cap=1024):
    """Divisor of n, multiple of `gran`, <= cap; prefers >=2 grid steps."""
    hi = min(cap, n)
    if n >= 2 * gran:
        hi = min(hi, n // 2)          # leave at least 2 grid steps when possible
    for t in range(hi, 0, -1):
        if n % t == 0 and t % gran == 0:
            return t
    return n                           # full-extent block (always legal)


def _gather_matrix(g, W, s, dtype):
    """One-hot D: (g*W, s*s*g*W) with D[h*W+w, (s*h+dh)*s*W + s*w+dw] = 1."""
    gw = g * W
    p = jax.lax.broadcasted_iota(jnp.int32, (gw, s * s * gw), 0)  # packed input col
    q = jax.lax.broadcasted_iota(jnp.int32, (gw, s * s * gw), 1)  # packed output col
    h_in, w_in = p // W, p % W
    h_out = (q // (s * W)) // s
    w_out = (q % (s * W)) // s
    return ((h_in == h_out) & (w_in == w_out)).astype(dtype)


def _nearest_up_kernel(x_ref, d_ref, o_ref, *, precision):
    # x: (tm, g*W)   d: (g*W, s*s*g*W)   o: (tm, s*s*g*W)
    o_ref[...] = jnp.dot(
        x_ref[...],
        d_ref[...],
        preferred_element_type=jnp.float32,
        precision=precision,
    ).astype(o_ref.dtype)


def upblock_forward(x, scale=2):
    """UpBlock.forward: nearest-neighbour upsample by `scale` on an NCHW tensor."""
    N, C, H, W = x.shape
    s = int(scale)
    dtype = x.dtype
    M = N * C * H

    g = _pick_group(M, W)              # H-rows packed into the lane axis
    gw = g * W
    mg = M // g                        # packed rows
    gran = _sublane_granularity(dtype)
    tm = _pick_row_tile(mg, gran)
    grid = (mg // tm,)

    x_packed = x.reshape(mg, gw)       # free row-major view
    D = _gather_matrix(g, W, s, dtype)

    # Exact f32 copy through the MXU needs HIGHEST precision (default truncates
    # operands to bf16); bf16/int8 one-hot matmuls are exact at native rate.
    precision = jax.lax.Precision.HIGHEST if dtype == jnp.float32 else None

    out_packed = pl.pallas_call(
        functools.partial(_nearest_up_kernel, precision=precision),
        out_shape=jax.ShapeDtypeStruct((mg, s * s * gw), dtype),
        grid=grid,
        in_specs=[
            pl.BlockSpec((tm, gw), lambda i: (i, 0)),
            pl.BlockSpec((gw, s * s * gw), lambda i: (0, 0)),  # resident across steps
        ],
        out_specs=pl.BlockSpec((tm, s * s * gw), lambda i: (i, 0)),
        compiler_params=pltpu.CompilerParams(
            dimension_semantics=("parallel",),
        ),
    )(x_packed, D)

    # (mg, s*s*gw) -> (N, C, s*H, s*W): free row-major reshape (no transpose).
    return out_packed.reshape(N, C, s * H, s * W)


if __name__ == "__main__":
    key = jax.random.PRNGKey(0)
    N, C, H, W = 2, 4, 16, 16
    x = jax.random.normal(key, (N, C, H, W), jnp.float32)

    up = jax.jit(functools.partial(upblock_forward, scale=2))
    out = up(x)
    jax.block_until_ready(out)

    # Reference: F.interpolate(x, scale_factor=2, mode='nearest') on NCHW.
    ref = jnp.repeat(jnp.repeat(x, 2, axis=2), 2, axis=3)
    assert out.shape == (N, C, 2 * H, 2 * W), out.shape
    err = float(jnp.max(jnp.abs(out - ref)))
    assert err < 1e-4, f"max abs error {err}"
    print("KERNEL_OK")
</pallas_src>

<mosaic_0001>
module attributes {stable_mosaic.version = 11 : i64} {
  func.func @_nearest_up_kernel(%arg0: i32, %arg1: memref<8x128xf32, #tpu.memory_space<vmem>>, %arg2: memref<128x512xf32, #tpu.memory_space<vmem>>, %arg3: memref<8x512xf32, #tpu.memory_space<vmem>>) attributes {dimension_semantics = [#tpu.dimension_semantics<parallel>], iteration_bounds = array<i64: 2>, scalar_prefetch = 0 : i64, scratch_operands = 0 : i64, tpu.core_type = #tpu.core_type<tc>, window_params = [{transform_indices = @transform_0, window_bounds = array<i64: 8, 128>}, {pipeline_mode = #tpu.pipeline_mode<synchronous>, transform_indices = @transform_1, window_bounds = array<i64: 128, 512>}, {transform_indices = @transform_2, window_bounds = array<i64: 8, 512>}]} {
    %c0 = arith.constant 0 : index
    %c0_0 = arith.constant 0 : index
    %0 = vector.load %arg1[%c0, %c0_0] : memref<8x128xf32, #tpu.memory_space<vmem>>, vector<8x128xf32>
    %c0_1 = arith.constant 0 : index
    %c0_2 = arith.constant 0 : index
    %1 = vector.load %arg2[%c0_1, %c0_2] : memref<128x512xf32, #tpu.memory_space<vmem>>, vector<128x512xf32>
    %cst = arith.constant dense<0.000000e+00> : vector<8x512xf32>
    %2 = tpu.matmul %0, %1, %cst {dimension_numbers = #tpu.dot_dimension_numbers<[1], [0], [0], [1], [0, 0, 1, 1], [], []>, precision = #tpu.contract_precision<fp32>} : vector<8x128xf32>, vector<128x512xf32>, vector<8x512xf32> -> vector<8x512xf32>
    %c0_3 = arith.constant 0 : index
    %c0_4 = arith.constant 0 : index
    %3 = vector.load %arg3[%c0_3, %c0_4] : memref<8x512xf32, #tpu.memory_space<vmem>>, vector<8x512xf32>
    tpu.vector_store %arg3[%c0_3, %c0_4], %2 {strides = array<i32>} : memref<8x512xf32, #tpu.memory_space<vmem>>, vector<8x512xf32>,
    return
  }
  func.func @transform_0(%arg0: i32) -> (i32, i32) {
    %c0_i32 = arith.constant 0 : i32
    %c0_i32_0 = arith.constant 0 : i32
    return %arg0, %c0_i32 : i32, i32
  }
  func.func @transform_1(%arg0: i32) -> (i32, i32) {
    %c0_i32 = arith.constant 0 : i32
    %c0_i32_0 = arith.constant 0 : i32
    %c0_i32_1 = arith.constant 0 : i32
    return %c0_i32, %c0_i32_0 : i32, i32
  }
  func.func @transform_2(%arg0: i32) -> (i32, i32) {
    %c0_i32 = arith.constant 0 : i32
    %c0_i32_0 = arith.constant 0 : i32
    return %arg0, %c0_i32 : i32, i32
  }
}

</mosaic_0001>

<llo_original>
// kernel: upblock_forward.1
$region0: #{upblock_forward.1}
  #allocation0 [shape = 'u32[]', space=smem, size = 0x4, offset = 0x4, fixed_abs, tag = 'smem constant byte address 0x4 - core index']
  #allocation1 [shape = 'u32[144,128]{1,0:T(1,128)}', space=vmem, size = 0x12000, scoped, tag = 'internal scratch']
  %s0 = inlined_call_operand.vmem [shape: f32[16,128], index: 0, kind: input, shape index: {}]
  %s1 = inlined_call_operand.vmem [shape: f32[128,512], index: 1, kind: input, shape index: {}]
  %s2 = inlined_call_operand.vmem [shape: f32[16,512], index: 2, kind: output, shape index: {}]
  %s3 = sld [smem:[#allocation0]]
  $region41: #{upblock_forward.1} parent=0
    _
  %s5 = ssub.s32 1, %s3
  %s6 = scalar_select 0, %s5, %s3
  loop: start=0, step=1, limit=4
  $region2: #{upblock_forward.1} parent=0 // loop_pre_header
    _
  $region3: #{upblock_forward.1} parent=0 // loop_header
    %s8 = sphi 0, %s12
    %p9 = scmp.ge.s32.totalorder %s8, 4
    %s18 = sphi 0, %s20
    %s21 = sphi 0, %s18
    %s22 = sphi 0, %s21
    %s38 = sphi 0, %s22
    %s42 = sphi 0, %s42
    %s44 = sphi 0, %s42
    %s45 = sphi 0, %s44
    %s59 = sphi 0, %s45
    %s65 = sphi 0, %s67
    %s68 = sphi 0, %s65
    %s69 = sphi 0, %s68
    %s85 = sphi 0, %s69
  $region4: #{upblock_forward.1} parent=0 // loop_header_branch
    %11 = sbr.rel (%p9) target = $region8
  $region5: #{upblock_forward.1} parent=0 // loop_body
    %s13 = ssub.s32 %s8, 1
    %s14 = ssub.s32 %s8, 2
    %s15 = sadd.s32 %s8, 1
    %s16 = ssub.s32 %s8, %s15
    %p17 = scmp.eq.s32.totalorder %s16, 0
    %s19 = sadd.s32 %s18, 1
    %s20 = scalar_select %p17, %s18, %s19
    %p23 = pneg %p17
    %p24 = scmp.eq.s32.totalorder %s8, 1
    %p25 = por %p23, %p24
    %p26 = scmp.ne.s32.totalorder %s18, %s21
    %p27 = scmp.eq.s32.totalorder %s8, 0
    %p28 = por %p26, %p27
    %p29 = scmp.ne.s32.totalorder %s18, %s21
    %p30 = scmp.eq.s32.totalorder %s13, 1
    %p31 = por %p29, %p30
    %p32 = scmp.ne.s32.totalorder %s21, %s22
    %p33 = scmp.eq.s32.totalorder %s13, 0
    %p34 = por %p32, %p33
    %p35 = scmp.ne.s32.totalorder %s21, %s22
    %p36 = scmp.eq.s32.totalorder %s14, 1
    %p37 = por %p35, %p36
    %p39 = scmp.ne.s32.totalorder %s22, %s38
    %p40 = scmp.eq.s32.totalorder %s14, 0
    %p41 = por %p39, %p40
    %s43 = sadd.s32 %s42, 1
    %p46 = scmp.eq.s32.totalorder %s8, 1
    %p47 = scmp.ne.s32.totalorder %s42, %s44
    %p48 = scmp.eq.s32.totalorder %s8, 0
    %p49 = por %p47, %p48
    %p50 = scmp.ne.s32.totalorder %s42, %s44
    %p51 = scmp.eq.s32.totalorder %s13, 1
    %p52 = por %p50, %p51
    %p53 = scmp.ne.s32.totalorder %s44, %s45
    %p54 = scmp.eq.s32.totalorder %s13, 0
    %p55 = por %p53, %p54
    %p56 = scmp.ne.s32.totalorder %s44, %s45
    %p57 = scmp.eq.s32.totalorder %s14, 1
    %p58 = por %p56, %p57
    %p60 = scmp.ne.s32.totalorder %s45, %s59
    %p61 = scmp.eq.s32.totalorder %s14, 0
    %p62 = por %p60, %p61
    %s63 = ssub.s32 %s8, %s15
    %p64 = scmp.eq.s32.totalorder %s63, 0
    %s66 = sadd.s32 %s65, 1
    %s67 = scalar_select %p64, %s65, %s66
    %p70 = pneg %p64
    %p71 = scmp.eq.s32.totalorder %s8, 1
    %p72 = por %p70, %p71
    %p73 = scmp.ne.s32.totalorder %s65, %s68
    %p74 = scmp.eq.s32.totalorder %s8, 0
    %p75 = por %p73, %p74
    %p76 = scmp.ne.s32.totalorder %s65, %s68
    %p77 = scmp.eq.s32.totalorder %s13, 1
    %p78 = por %p76, %p77
    %p79 = scmp.ne.s32.totalorder %s68, %s69
    %p80 = scmp.eq.s32.totalorder %s13, 0
    %p81 = por %p79, %p80
    %p82 = scmp.ne.s32.totalorder %s68, %s69
    %p83 = scmp.eq.s32.totalorder %s14, 1
    %p84 = por %p82, %p83
    %p86 = scmp.ne.s32.totalorder %s69, %s85
    %p87 = scmp.eq.s32.totalorder %s14, 0
    %p88 = por %p86, %p87
    %p89 = scmp.le.s32.totalorder 1, %s8
    %p90 = scmp.lt.s32.totalorder %s8, 3
    %p91 = pnand %p89, %p90
    %p92 = pneg %p91
    // Predicated region
    $region9: #{upblock_forward.1} parent=5 // pred_check
      _
    $region10: #{upblock_forward.1} parent=5 // pred_check_branch
      %94 = sbr.rel (%p91) target = $region12
    $region11: #{upblock_forward.1} parent=5 // pred_region
      %s95 = ssub.s32 %s8, 1
      // Predicated region
      $region13: #{upblock_forward.1} parent=11 // pred_check
        %p96 = pneg %p55
      $region14: #{upblock_forward.1} parent=11 // pred_check_branch
        %98 = sbr.rel (%p96) target = $region16
      $region15: #{upblock_forward.1} parent=11 // pred_region
        _
      $region16: #{upblock_forward.1} parent=11 // pred_fallthru
        _
    $region12: #{upblock_forward.1} parent=5 // pred_fallthru
      _
    %p99 = scmp.lt.s32.totalorder %s8, 2
    // Predicated region
    $region17: #{upblock_forward.1} parent=5 // pred_check
      %p100 = pneg %p99
    $region18: #{upblock_forward.1} parent=5 // pred_check_branch
      %102 = sbr.rel (%p100) target = $region20
    $region19: #{upblock_forward.1} parent=5 // pred_region
      // Predicated region
      $region21: #{upblock_forward.1} parent=19 // pred_check
        %p103 = pneg %p28
      $region22: #{upblock_forward.1} parent=19 // pred_check_branch
        %105 = sbr.rel (%p103) target = $region24
      $region23: #{upblock_forward.1} parent=19 // pred_region
        %p106 = scmp.lt.s32.totalorder %s8, 1
        %s107 = scalar_select %p106, %s8, 1
        %s108 = smul.addr %s107, 8
        %s109 = scalar_lea.vmem %s0, %s108
      $region24: #{upblock_forward.1} parent=19 // pred_fallthru
        _
    $region20: #{upblock_forward.1} parent=5 // pred_fallthru
      _
    %p110 = scmp.le.s32.totalorder 1, %s8
    %p111 = scmp.lt.s32.totalorder %s8, 3
    %p112 = pnand %p110, %p111
    %p113 = pneg %p112
    // Predicated region
    $region25: #{upblock_forward.1} parent=5 // pred_check
      _
    $region26: #{upblock_forward.1} parent=5 // pred_check_branch
      %115 = sbr.rel (%p112) target = $region28
    $region27: #{upblock_forward.1} parent=5 // pred_region
      %s116 = ssub.s32 %s8, 1
      %p117 = scmp.lt.s32.totalorder %s13, 1
      %s118 = scalar_select %p117, %s13, 1
      %s119 = smul.addr %s118, 8
      %s120 = scalar_lea.vmem %s0, %s119
      %p121 = pneg %p34
      %p122 = pneg %p31
      %p123 = pneg %p55
      %p124 = pneg %p52
      %p125 = pneg %p81
      %p126 = pneg %p78
      %p127 = scmp.lt.s32.totalorder %s13, 1
      %s128 = scalar_select %p127, %s13, 1
      %s129 = smul.addr %s128, 4
      %s130 = smul.addr %s129, 8
      %s131 = scalar_lea.vmem %s2, %s130
      %p132 = scmp.lt.s32.totalorder %s13, 1
      %s133 = scalar_select %p132, %s13, 1
      %s134 = smul.addr %s133, 8
      %s135 = scalar_lea.vmem %s0, %s134
      %p136 = scmp.lt.s32.totalorder %s13, 1
      %s137 = scalar_select %p136, %s13, 1
      %s138 = smul.addr %s137, 4
      %s139 = smul.addr %s138, 8
      %s140 = scalar_lea.vmem %s2, %s139
      %v141 = vld [vmem:[%s135] sm:$0xff]
      %v142 = vld [vmem:[%s1] sm:$0xff]
      %v143 = vld [vmem:[%s1 + $0x8] sm:$0xff]
      %v144 = vld [vmem:[%s1 + $0x10] sm:$0xff]
      %v145 = vld [vmem:[%s1 + $0x18] sm:$0xff]
      %v146 = vld [vmem:[%s1 + $0x20] sm:$0xff]
      %v147 = vld [vmem:[%s1 + $0x28] sm:$0xff]
      %v148 = vld [vmem:[%s1 + $0x30] sm:$0xff]
      %v149 = vld [vmem:[%s1 + $0x38] sm:$0xff]
      %v150 = vld [vmem:[%s1 + $0x40] sm:$0xff]
      %v151 = vld [vmem:[%s1 + $0x48] sm:$0xff]
      %v152 = vld [vmem:[%s1 + $0x50] sm:$0xff]
      %v153 = vld [vmem:[%s1 + $0x58] sm:$0xff]
      %v154 = vld [vmem:[%s1 + $0x60] sm:$0xff]
      %v155 = vld [vmem:[%s1 + $0x68] sm:$0xff]
      %v156 = vld [vmem:[%s1 + $0x70] sm:$0xff]
      %v157 = vld [vmem:[%s1 + $0x78] sm:$0xff]
      %v158 = vld [vmem:[%s1 + $0x80] sm:$0xff]
      %v159 = vld [vmem:[%s1 + $0x88] sm:$0xff]
      %v160 = vld [vmem:[%s1 + $0x90] sm:$0xff]
      %v161 = vld [vmem:[%s1 + $0x98] sm:$0xff]
      %v162 = vld [vmem:[%s1 + $0xa0] sm:$0xff]
      %v163 = vld [vmem:[%s1 + $0xa8] sm:$0xff]
      %v164 = vld [vmem:[%s1 + $0xb0] sm:$0xff]
      %v165 = vld [vmem:[%s1 + $0xb8] sm:$0xff]
      %v166 = vld [vmem:[%s1 + $0xc0] sm:$0xff]
      %v167 = vld [vmem:[%s1 + $0xc8] sm:$0xff]
      %v168 = vld [vmem:[%s1 + $0xd0] sm:$0xff]
      %v169 = vld [vmem:[%s1 + $0xd8] sm:$0xff]
      %v170 = vld [vmem:[%s1 + $0xe0] sm:$0xff]
      %v171 = vld [vmem:[%s1 + $0xe8] sm:$0xff]
      %v172 = vld [vmem:[%s1 + $0xf0] sm:$0xff]
      %v173 = vld [vmem:[%s1 + $0xf8] sm:$0xff]
      %v174 = vld [vmem:[%s1 + $0x100] sm:$0xff]
      %v175 = vld [vmem:[%s1 + $0x108] sm:$0xff]
      %v176 = vld [vmem:[%s1 + $0x110] sm:$0xff]
      %v177 = vld [vmem:[%s1 + $0x118] sm:$0xff]
      %v178 = vld [vmem:[%s1 + $0x120] sm:$0xff]
      %v179 = vld [vmem:[%s1 + $0x128] sm:$0xff]
      %v180 = vld [vmem:[%s1 + $0x130] sm:$0xff]
      %v181 = vld [vmem:[%s1 + $0x138] sm:$0xff]
      %v182 = vld [vmem:[%s1 + $0x140] sm:$0xff]
      %v183 = vld [vmem:[%s1 + $0x148] sm:$0xff]
      %v184 = vld [vmem:[%s1 + $0x150] sm:$0xff]
      %v185 = vld [vmem:[%s1 + $0x158] sm:$0xff]
      %v186 = vld [vmem:[%s1 + $0x160] sm:$0xff]
      %v187 = vld [vmem:[%s1 + $0x168] sm:$0xff]
      %v188 = vld [vmem:[%s1 + $0x170] sm:$0xff]
      %v189 = vld [vmem:[%s1 + $0x178] sm:$0xff]
      %v190 = vld [vmem:[%s1 + $0x180] sm:$0xff]
      %v191 = vld [vmem:[%s1 + $0x188] sm:$0xff]
      %v192 = vld [vmem:[%s1 + $0x190] sm:$0xff]
      %v193 = vld [vmem:[%s1 + $0x198] sm:$0xff]
      %v194 = vld [vmem:[%s1 + $0x1a0] sm:$0xff]
      %v195 = vld [vmem:[%s1 + $0x1a8] sm:$0xff]
      %v196 = vld [vmem:[%s1 + $0x1b0] sm:$0xff]
      %v197 = vld [vmem:[%s1 + $0x1b8] sm:$0xff]
      %v198 = vld [vmem:[%s1 + $0x1c0] sm:$0xff]
      %v199 = vld [vmem:[%s1 + $0x1c8] sm:$0xff]
      %v200 = vld [vmem:[%s1 + $0x1d0] sm:$0xff]
      %v201 = vld [vmem:[%s1 + $0x1d8] sm:$0xff]
      %v202 = vld [vmem:[%s1 + $0x1e0] sm:$0xff]
      %v203 = vld [vmem:[%s1 + $0x1e8] sm:$0xff]
      %v204 = vld [vmem:[%s1 + $0x1f0] sm:$0xff]
      %v205 = vld [vmem:[%s1 + $0x1f8] sm:$0xff]
      %v206 = vand.u32 %v143, 4294901760
      %207 = vmatprep.subr.mxu0 %v206
      %v208 = vand.u32 %v142, 4294901760
      %209 = vmatpush1.msra.mxu0 %v208
      %v210 = vand.u32 %v147, 4294901760
      %211 = vmatprep.subr.mxu0 %v210
      %v212 = vand.u32 %v146, 4294901760
      %213 = vmatpush1.msra.mxu0 %v212
      %v214 = vand.u32 %v151, 4294901760
      %215 = vmatprep.subr.mxu0 %v214
      %v216 = vand.u32 %v150, 4294901760
      %217 = vmatpush1.msra.mxu0 %v216
      %v218 = vand.u32 %v155, 4294901760
      %219 = vmatprep.subr.mxu0 %v218
      %v220 = vand.u32 %v154, 4294901760
      %221 = vmatpush1.msra.mxu0 %v220
      %v222 = vand.u32 %v159, 4294901760
      %223 = vmatprep.subr.mxu0 %v222
      %v224 = vand.u32 %v158, 4294901760
      %225 = vmatpush1.msra.mxu0 %v224
      %v226 = vand.u32 %v163, 4294901760
      %227 = vmatprep.subr.mxu0 %v226
      %v228 = vand.u32 %v162, 4294901760
      %229 = vmatpush1.msra.mxu0 %v228
      %v230 = vand.u32 %v167, 4294901760
      %231 = vmatprep.subr.mxu0 %v230
      %v232 = vand.u32 %v166, 4294901760
      %233 = vmatpush1.msra.mxu0 %v232
      %v234 = vand.u32 %v171, 4294901760
      %235 = vmatprep.subr.mxu0 %v234
      %v236 = vand.u32 %v170, 4294901760
      %237 = vmatpush1.msra.mxu0 %v236
      %v238 = vand.u32 %v175, 4294901760
      %239 = vmatprep.subr.mxu0 %v238
      %v240 = vand.u32 %v174, 4294901760
      %241 = vmatpush1.msra.mxu0 %v240
      %v242 = vand.u32 %v179, 4294901760
      %243 = vmatprep.subr.mxu0 %v242
      %v244 = vand.u32 %v178, 4294901760
      %245 = vmatpush1.msra.mxu0 %v244
      %v246 = vand.u32 %v183, 4294901760
      %247 = vmatprep.subr.mxu0 %v246
      %v248 = vand.u32 %v182, 4294901760
      %249 = vmatpush1.msra.mxu0 %v248
      %v250 = vand.u32 %v187, 4294901760
      %251 = vmatprep.subr.mxu0 %v250
      %v252 = vand.u32 %v186, 4294901760
      %253 = vmatpush1.msra.mxu0 %v252
      %v254 = vand.u32 %v191, 4294901760
      %255 = vmatprep.subr.mxu0 %v254
      %v256 = vand.u32 %v190, 4294901760
      %257 = vmatpush1.msra.mxu0 %v256
      %v258 = vand.u32 %v195, 4294901760
      %259 = vmatprep.subr.mxu0 %v258
      %v260 = vand.u32 %v194, 4294901760
      %261 = vmatpush1.msra.mxu0 %v260
      %v262 = vand.u32 %v199, 4294901760
      %263 = vmatprep.subr.mxu0 %v262
      %v264 = vand.u32 %v198, 4294901760
      %265 = vmatpush1.msra.mxu0 %v264
      %v266 = vand.u32 %v203, 4294901760
      %267 = vmatprep.subr.mxu0 %v266
      %v268 = vand.u32 %v202, 4294901760
      %269 = vmatpush1.msra.mxu0 %v268
      %270 = vmatprep.subr.mxu0 0.0
      %271 = vmatpush1.msra.mxu0 0.0
      %272 = vmatprep.subr.mxu0 0.0
      %273 = vmatpush1.msra.mxu0 0.0
      %274 = vmatprep.subr.mxu0 0.0
      %275 = vmatpush1.msra.mxu0 0.0
      %276 = vmatprep.subr.mxu0 0.0
      %277 = vmatpush1.msra.mxu0 0.0
      %278 = vmatprep.subr.mxu0 0.0
      %279 = vmatpush1.msra.mxu0 0.0
      %280 = vmatprep.subr.mxu0 0.0
      %281 = vmatpush1.msra.mxu0 0.0
      %282 = vmatprep.subr.mxu0 0.0
      %283 = vmatpush1.msra.mxu0 0.0
      %284 = vmatprep.subr.mxu0 0.0
      %285 = vmatpush1.msra.mxu0 0.0
      %286 = vmatprep.subr.mxu0 0.0
      %287 = vmatpush1.msra.mxu0 0.0
      %288 = vmatprep.subr.mxu0 0.0
      %289 = vmatpush1.msra.mxu0 0.0
      %290 = vmatprep.subr.mxu0 0.0
      %291 = vmatpush1.msra.mxu0 0.0
      %292 = vmatprep.subr.mxu0 0.0
      %293 = vmatpush1.msra.mxu0 0.0
      %294 = vmatprep.subr.mxu0 0.0
      %295 = vmatpush1.msra.mxu0 0.0
      %296 = vmatprep.subr.mxu0 0.0
      %297 = vmatpush1.msra.mxu0 0.0
      %298 = vmatprep.subr.mxu0 0.0
      %299 = vmatpush1.msra.mxu0 0.0
      %300 = vmatprep.subr.mxu0 0.0
      %301 = vmatpush1.msra.mxu0 0.0
      %302 = vmatprep.mubr.f32.mxu0 0.0
      %v303 = vand.u32 %v141, 4294901760
      %v304 = vsub.f32 %v141, %v303
      %v305 = vand.u32 %v304, 4294901760
      %v306 = vsub.f32 %v304, %v305
      %v307 = vand.u32 %v306, 4294901760
      %308 = vmatmul.mubr.f32.gmra.mrb[0].mxu0 %v307
      %v309 = vpop.f32.mrb[0].mxu0
      %v310 = vadd.f32 0.0, %v309
      %v311 = vpop.f32.mrb[0].mxu0
      %v312 = vadd.f32 0.0, %v311
      %313 = vdwg.mxu0
      %v314 = vand.u32 %v143, 4294901760
      %v315 = vsub.f32 %v143, %v314
      %v316 = vand.u32 %v315, 4294901760
      %v317 = vsub.f32 %v315, %v316
      %v318 = vand.u32 %v317, 4294901760
      %319 = vmatprep.subr.mxu0 %v318
      %v320 = vand.u32 %v142, 4294901760
      %v321 = vsub.f32 %v142, %v320
      %v322 = vand.u32 %v321, 4294901760
      %v323 = vsub.f32 %v321, %v322
      %v324 = vand.u32 %v323, 4294901760
      %325 = vmatpush1.msra.mxu0 %v324
      %v326 = vand.u32 %v147, 4294901760
      %v327 = vsub.f32 %v147, %v326
      %v328 = vand.u32 %v327, 4294901760
      %v329 = vsub.f32 %v327, %v328
      %v330 = vand.u32 %v329, 4294901760
      %331 = vmatprep.subr.mxu0 %v330
      %v332 = vand.u32 %v146, 4294901760
      %v333 = vsub.f32 %v146, %v332
      %v334 = vand.u32 %v333, 4294901760
      %v335 = vsub.f32 %v333, %v334
      %v336 = vand.u32 %v335, 4294901760
      %337 = vmatpush1.msra.mxu0 %v336
      %v338 = vand.u32 %v151, 4294901760
      %v339 = vsub.f32 %v151, %v338
      %v340 = vand.u32 %v339, 4294901760
      %v341 = vsub.f32 %v339, %v340
      %v342 = vand.u32 %v341, 4294901760
      %343 = vmatprep.subr.mxu0 %v342
      %v344 = vand.u32 %v150, 4294901760
      %v345 = vsub.f32 %v150, %v344
      %v346 = vand.u32 %v345, 4294901760
      %v347 = vsub.f32 %v345, %v346
      %v348 = vand.u32 %v347, 4294901760
      %349 = vmatpush1.msra.mxu0 %v348
      %v350 = vand.u32 %v155, 4294901760
      %v351 = vsub.f32 %v155, %v350
      %v352 = vand.u32 %v351, 4294901760
      %v353 = vsub.f32 %v351, %v352
      %v354 = vand.u32 %v353, 4294901760
      %355 = vmatprep.subr.mxu0 %v354
      %v356 = vand.u32 %v154, 4294901760
      %v357 = vsub.f32 %v154, %v356
      %v358 = vand.u32 %v357, 4294901760
      %v359 = vsub.f32 %v357, %v358
      %v360 = vand.u32 %v359, 4294901760
      %361 = vmatpush1.msra.mxu0 %v360
      %v362 = vand.u32 %v159, 4294901760
      %v363 = vsub.f32 %v159, %v362
      %v364 = vand.u32 %v363, 4294901760
      %v365 = vsub.f32 %v363, %v364
      %v366 = vand.u32 %v365, 4294901760
      %367 = vmatprep.subr.mxu0 %v366
      %v368 = vand.u32 %v158, 4294901760
      %v369 = vsub.f32 %v158, %v368
      %v370 = vand.u32 %v369, 4294901760
      %v371 = vsub.f32 %v369, %v370
      %v372 = vand.u32 %v371, 4294901760
      %373 = vmatpush1.msra.mxu0 %v372
      %v374 = vand.u32 %v163, 4294901760
      %v375 = vsub.f32 %v163, %v374
      %v376 = vand.u32 %v375, 4294901760
      %v377 = vsub.f32 %v375, %v376
      %v378 = vand.u32 %v377, 4294901760
      %379 = vmatprep.subr.mxu0 %v378
      %v380 = vand.u32 %v162, 4294901760
      %v381 = vsub.f32 %v162, %v380
      %v382 = vand.u32 %v381, 4294901760
      %v383 = vsub.f32 %v381, %v382
      %v384 = vand.u32 %v383, 4294901760
      %385 = vmatpush1.msra.mxu0 %v384
      %v386 = vand.u32 %v167, 4294901760
      %v387 = vsub.f32 %v167, %v386
      %v388 = vand.u32 %v387, 4294901760
      %v389 = vsub.f32 %v387, %v388
      %v390 = vand.u32 %v389, 4294901760
      %391 = vmatprep.subr.mxu0 %v390
      %v392 = vand.u32 %v166, 4294901760
      %v393 = vsub.f32 %v166, %v392
      %v394 = vand.u32 %v393, 4294901760
      %v395 = vsub.f32 %v393, %v394
      %v396 = vand.u32 %v395, 4294901760
      %397 = vmatpush1.msra.mxu0 %v396
      %v398 = vand.u32 %v171, 4294901760
      %v399 = vsub.f32 %v171, %v398
      %v400 = vand.u32 %v399, 4294901760
      %v401 = vsub.f32 %v399, %v400
      %v402 = vand.u32 %v401, 4294901760
      %403 = vmatprep.subr.mxu0 %v402
      %v404 = vand.u32 %v170, 4294901760
      %v405 = vsub.f32 %v170, %v404
      %v406 = vand.u32 %v405, 4294901760
      %v407 = vsub.f32 %v405, %v406
      %v408 = vand.u32 %v407, 4294901760
      %409 = vmatpush1.msra.mxu0 %v408
      %v410 = vand.u32 %v175, 4294901760
      %v411 = vsub.f32 %v175, %v410
      %v412 = vand.u32 %v411, 4294901760
      %v413 = vsub.f32 %v411, %v412
      %v414 = vand.u32 %v413, 4294901760
      %415 = vmatprep.subr.mxu0 %v414
      %v416 = vand.u32 %v174, 4294901760
      %v417 = vsub.f32 %v174, %v416
      %v418 = vand.u32 %v417, 4294901760
      %v419 = vsub.f32 %v417, %v418
      %v420 = vand.u32 %v419, 4294901760
      %421 = vmatpush1.msra.mxu0 %v420
      %v422 = vand.u32 %v179, 4294901760
      %v423 = vsub.f32 %v179, %v422
      %v424 = vand.u32 %v423, 4294901760
      %v425 = vsub.f32 %v423, %v424
      %v426 = vand.u32 %v425, 4294901760
      %427 = vmatprep.subr.mxu0 %v426
      %v428 = vand.u32 %v178, 4294901760
      %v429 = vsub.f32 %v178, %v428
      %v430 = vand.u32 %v429, 4294901760
      %v431 = vsub.f32 %v429, %v430
      %v432 = vand.u32 %v431, 4294901760
      %433 = vmatpush1.msra.mxu0 %v432
      %v434 = vand.u32 %v183, 4294901760
      %v435 = vsub.f32 %v183, %v434
      %v436 = vand.u32 %v435, 4294901760
      %v437 = vsub.f32 %v435, %v436
      %v438 = vand.u32 %v437, 4294901760
      %439 = vmatprep.subr.mxu0 %v438
      %v440 = vand.u32 %v182, 4294901760
      %v441 = vsub.f32 %v182, %v440
      %v442 = vand.u32 %v441, 4294901760
      %v443 = vsub.f32 %v441, %v442
      %v444 = vand.u32 %v443, 4294901760
      %445 = vmatpush1.msra.mxu0 %v444
      %v446 = vand.u32 %v187, 4294901760
      %v447 = vsub.f32 %v187, %v446
      %v448 = vand.u32 %v447, 4294901760
      %v449 = vsub.f32 %v447, %v448
      %v450 = vand.u32 %v449, 4294901760
      %451 = vmatprep.subr.mxu0 %v450
      %v452 = vand.u32 %v186, 4294901760
      %v453 = vsub.f32 %v186, %v452
      %v454 = vand.u32 %v453, 4294901760
      %v455 = vsub.f32 %v453, %v454
      %v456 = vand.u32 %v455, 4294901760
      %457 = vmatpush1.msra.mxu0 %v456
      %v458 = vand.u32 %v191, 4294901760
      %v459 = vsub.f32 %v191, %v458
      %v460 = vand.u32 %v459, 4294901760
      %v461 = vsub.f32 %v459, %v460
      %v462 = vand.u32 %v461, 4294901760
      %463 = vmatprep.subr.mxu0 %v462
      %v464 = vand.u32 %v190, 4294901760
      %v465 = vsub.f32 %v190, %v464
      %v466 = vand.u32 %v465, 4294901760
      %v467 = vsub.f32 %v465, %v466
      %v468 = vand.u32 %v467, 4294901760
      %469 = vmatpush1.msra.mxu0 %v468
      %v470 = vand.u32 %v195, 4294901760
      %v471 = vsub.f32 %v195, %v470
      %v472 = vand.u32 %v471, 4294901760
      %v473 = vsub.f32 %v471, %v472
      %v474 = vand.u32 %v473, 4294901760
      %475 = vmatprep.subr.mxu0 %v474
      %v476 = vand.u32 %v194, 4294901760
      %v477 = vsub.f32 %v194, %v476
      %v478 = vand.u32 %v477, 4294901760
      %v479 = vsub.f32 %v477, %v478
      %v480 = vand.u32 %v479, 4294901760
      %481 = vmatpush1.msra.mxu0 %v480
      %v482 = vand.u32 %v199, 4294901760
      %v483 = vsub.f32 %v199, %v482
      %v484 = vand.u32 %v483, 4294901760
      %v485 = vsub.f32 %v483, %v484
      %v486 = vand.u32 %v485, 4294901760
      %487 = vmatprep.subr.mxu0 %v486
      %v488 = vand.u32 %v198, 4294901760
      %v489 = vsub.f32 %v198, %v488
      %v490 = vand.u32 %v489, 4294901760
      %v491 = vsub.f32 %v489, %v490
      %v492 = vand.u32 %v491, 4294901760
      %493 = vmatpush1.msra.mxu0 %v492
      %v494 = vand.u32 %v203, 4294901760
      %v495 = vsub.f32 %v203, %v494
      %v496 = vand.u32 %v495, 4294901760
      %v497 = vsub.f32 %v495, %v496
      %v498 = vand.u32 %v497, 4294901760
      %499 = vmatprep.subr.mxu0 %v498
      %v500 = vand.u32 %v202, 4294901760
      %v501 = vsub.f32 %v202, %v500
      %v502 = vand.u32 %v501, 4294901760
      %v503 = vsub.f32 %v501, %v502
      %v504 = vand.u32 %v503, 4294901760
      %505 = vmatpush1.msra.mxu0 %v504
      %506 = vmatprep.subr.mxu0 0.0
      %507 = vmatpush1.msra.mxu0 0.0
      %508 = vmatprep.subr.mxu0 0.0
      %509 = vmatpush1.msra.mxu0 0.0
      %510 = vmatprep.subr.mxu0 0.0
      %511 = vmatpush1.msra.mxu0 0.0
      %512 = vmatprep.subr.mxu0 0.0
      %513 = vmatpush1.msra.mxu0 0.0
      %514 = vmatprep.subr.mxu0 0.0
      %515 = vmatpush1.msra.mxu0 0.0
      %516 = vmatprep.subr.mxu0 0.0
      %517 = vmatpush1.msra.mxu0 0.0
      %518 = vmatprep.subr.mxu0 0.0
      %519 = vmatpush1.msra.mxu0 0.0
      %520 = vmatprep.subr.mxu0 0.0
      %521 = vmatpush1.msra.mxu0 0.0
      %522 = vmatprep.subr.mxu0 0.0
      %523 = vmatpush1.msra.mxu0 0.0
      %524 = vmatprep.subr.mxu0 0.0
      %525 = vmatpush1.msra.mxu0 0.0
      %526 = vmatprep.subr.mxu0 0.0
      %527 = vmatpush1.msra.mxu0 0.0
      %528 = vmatprep.subr.mxu0 0.0
      %529 = vmatpush1.msra.mxu0 0.0
      %530 = vmatprep.subr.mxu0 0.0
      %531 = vmatpush1.msra.mxu0 0.0
      %532 = vmatprep.subr.mxu0 0.0
      %533 = vmatpush1.msra.mxu0 0.0
      %534 = vmatprep.subr.mxu0 0.0
      %535 = vmatpush1.msra.mxu0 0.0
      %536 = vmatprep.subr.mxu0 0.0
      %537 = vmatpush1.msra.mxu0 0.0
      %538 = vmatprep.mubr.f32.mxu0 0.0
      %v539 = vand.u32 %v141, 4294901760
      %540 = vmatmul.mubr.f32.gmra.mrb[0].mxu0 %v539
      %v541 = vpop.f32.mrb[0].mxu0
      %v542 = vadd.f32 %v310, %v541
      %v543 = vpop.f32.mrb[0].mxu0
      %v544 = vadd.f32 %v312, %v543
      %545 = vdwg.mxu0
      %v546 = vand.u32 %v143, 4294901760
      %v547 = vsub.f32 %v143, %v546
      %548 = vmatprep.subr.mxu0 %v547
      %v549 = vand.u32 %v142, 4294901760
      %v550 = vsub.f32 %v142, %v549
      %551 = vmatpush1.msra.mxu0 %v550
      %v552 = vand.u32 %v147, 4294901760
      %v553 = vsub.f32 %v147, %v552
      %554 = vmatprep.subr.mxu0 %v553
      %v555 = vand.u32 %v146, 4294901760
      %v556 = vsub.f32 %v146, %v555
      %557 = vmatpush1.msra.mxu0 %v556
      %v558 = vand.u32 %v151, 4294901760
      %v559 = vsub.f32 %v151, %v558
      %560 = vmatprep.subr.mxu0 %v559
      %v561 = vand.u32 %v150, 4294901760
      %v562 = vsub.f32 %v150, %v561
      %563 = vmatpush1.msra.mxu0 %v562
      %v564 = vand.u32 %v155, 4294901760
      %v565 = vsub.f32 %v155, %v564
      %566 = vmatprep.subr.mxu0 %v565
      %v567 = vand.u32 %v154, 4294901760
      %v568 = vsub.f32 %v154, %v567
      %569 = vmatpush1.msra.mxu0 %v568
      %v570 = vand.u32 %v159, 4294901760
      %v571 = vsub.f32 %v159, %v570
      %572 = vmatprep.subr.mxu0 %v571
      %v573 = vand.u32 %v158, 4294901760
      %v574 = vsub.f32 %v158, %v573
      %575 = vmatpush1.msra.mxu0 %v574
      %v576 = vand.u32 %v163, 4294901760
      %v577 = vsub.f32 %v163, %v576
      %578 = vmatprep.subr.mxu0 %v577
      %v579 = vand.u32 %v162, 4294901760
      %v580 = vsub.f32 %v162, %v579
      %581 = vmatpush1.msra.mxu0 %v580
      %v582 = vand.u32 %v167, 4294901760
      %v583 = vsub.f32 %v167, %v582
      %584 = vmatprep.subr.mxu0 %v583
      %v585 = vand.u32 %v166, 4294901760
      %v586 = vsub.f32 %v166, %v585
      %587 = vmatpush1.msra.mxu0 %v586
      %v588 = vand.u32 %v171, 4294901760
      %v589 = vsub.f32 %v171, %v588
      %590 = vmatprep.subr.mxu0 %v589
      %v591 = vand.u32 %v170, 4294901760
      %v592 = vsub.f32 %v170, %v591
      %593 = vmatpush1.msra.mxu0 %v592
      %v594 = vand.u32 %v175, 4294901760
      %v595 = vsub.f32 %v175, %v594
      %596 = vmatprep.subr.mxu0 %v595
      %v597 = vand.u32 %v174, 4294901760
      %v598 = vsub.f32 %v174, %v597
      %599 = vmatpush1.msra.mxu0 %v598
      %v600 = vand.u32 %v179, 4294901760
      %v601 = vsub.f32 %v179, %v600
      %602 = vmatprep.subr.mxu0 %v601
      %v603 = vand.u32 %v178, 4294901760
      %v604 = vsub.f32 %v178, %v603
      %605 = vmatpush1.msra.mxu0 %v604
      %v606 = vand.u32 %v183, 4294901760
      %v607 = vsub.f32 %v183, %v606
      %608 = vmatprep.subr.mxu0 %v607
      %v609 = vand.u32 %v182, 4294901760
      %v610 = vsub.f32 %v182, %v609
      %611 = vmatpush1.msra.mxu0 %v610
      %v612 = vand.u32 %v187, 4294901760
      %v613 = vsub.f32 %v187, %v612
      %614 = vmatprep.subr.mxu0 %v613
      %v615 = vand.u32 %v186, 4294901760
      %v616 = vsub.f32 %v186, %v615
      %617 = vmatpush1.msra.mxu0 %v616
      %v618 = vand.u32 %v191, 4294901760
      %v619 = vsub.f32 %v191, %v618
      %620 = vmatprep.subr.mxu0 %v619
      %v621 = vand.u32 %v190, 4294901760
      %v622 = vsub.f32 %v190, %v621
      %623 = vmatpush1.msra.mxu0 %v622
      %v624 = vand.u32 %v195, 4294901760
      %v625 = vsub.f32 %v195, %v624
      %626 = vmatprep.subr.mxu0 %v625
      %v627 = vand.u32 %v194, 4294901760
      %v628 = vsub.f32 %v194, %v627
      %629 = vmatpush1.msra.mxu0 %v628
      %v630 = vand.u32 %v199, 4294901760
      %v631 = vsub.f32 %v199, %v630
      %632 = vmatprep.subr.mxu0 %v631
      %v633 = vand.u32 %v198, 4294901760
      %v634 = vsub.f32 %v198, %v633
      %635 = vmatpush1.msra.mxu0 %v634
      %v636 = vand.u32 %v203, 4294901760
      %v637 = vsub.f32 %v203, %v636
      %638 = vmatprep.subr.mxu0 %v637
      %v639 = vand.u32 %v202, 4294901760
      %v640 = vsub.f32 %v202, %v639
      %641 = vmatpush1.msra.mxu0 %v640
      %642 = vmatprep.subr.mxu0 0.0
      %643 = vmatpush1.msra.mxu0 0.0
      %644 = vmatprep.subr.mxu0 0.0
      %645 = vmatpush1.msra.mxu0 0.0
      %646 = vmatprep.subr.mxu0 0.0
      %647 = vmatpush1.msra.mxu0 0.0
      %648 = vmatprep.subr.mxu0 0.0
      %649 = vmatpush1.msra.mxu0 0.0
      %650 = vmatprep.subr.mxu0 0.0
      %651 = vmatpush1.msra.mxu0 0.0
      %652 = vmatprep.subr.mxu0 0.0
      %653 = vmatpush1.msra.mxu0 0.0
      %654 = vmatprep.subr.mxu0 0.0
      %655 = vmatpush1.msra.mxu0 0.0
      %656 = vmatprep.subr.mxu0 0.0
      %657 = vmatpush1.msra.mxu0 0.0
      %658 = vmatprep.subr.mxu0 0.0
      %659 = vmatpush1.msra.mxu0 0.0
      %660 = vmatprep.subr.mxu0 0.0
      %661 = vmatpush1.msra.mxu0 0.0
      %662 = vmatprep.subr.mxu0 0.0
      %663 = vmatpush1.msra.mxu0 0.0
      %664 = vmatprep.subr.mxu0 0.0
      %665 = vmatpush1.msra.mxu0 0.0
      %666 = vmatprep.subr.mxu0 0.0
      %667 = vmatpush1.msra.mxu0 0.0
      %668 = vmatprep.subr.mxu0 0.0
      %669 = vmatpush1.msra.mxu0 0.0
      %670 = vmatprep.subr.mxu0 0.0
      %671 = vmatpush1.msra.mxu0 0.0
      %672 = vmatprep.subr.mxu0 0.0
      %673 = vmatpush1.msra.mxu0 0.0
      %674 = vmatprep.mubr.f32.mxu0 0.0
      %v675 = vand.u32 %v141, 4294901760
      %v676 = vsub.f32 %v141, %v675
      %677 = vmatmul.mubr.f32.gmra.mrb[0].mxu0 %v676
      %v678 = vpop.f32.mrb[0].mxu0
      %v679 = vadd.f32 %v542, %v678
      %v680 = vpop.f32.mrb[0].mxu0
      %v681 = vadd.f32 %v544, %v680
      %682 = vdwg.mxu0
      %v683 = vand.u32 %v143, 4294901760
      %684 = vmatprep.subr.mxu0 %v683
      %v685 = vand.u32 %v142, 4294901760
      %686 = vmatpush1.msra.mxu0 %v685
      %v687 = vand.u32 %v147, 4294901760
      %688 = vmatprep.subr.mxu0 %v687
      %v689 = vand.u32 %v146, 4294901760
      %690 = vmatpush1.msra.mxu0 %v689
      %v691 = vand.u32 %v151, 4294901760
      %692 = vmatprep.subr.mxu0 %v691
      %v693 = vand.u32 %v150, 4294901760
      %694 = vmatpush1.msra.mxu0 %v693
      %v695 = vand.u32 %v155, 4294901760
      %696 = vmatprep.subr.mxu0 %v695
      %v697 = vand.u32 %v154, 4294901760
      %698 = vmatpush1.msra.mxu0 %v697
      %v699 = vand.u32 %v159, 4294901760
      %700 = vmatprep.subr.mxu0 %v699
      %v701 = vand.u32 %v158, 4294901760
      %702 = vmatpush1.msra.mxu0 %v701
      %v703 = vand.u32 %v163, 4294901760
      %704 = vmatprep.subr.mxu0 %v703
      %v705 = vand.u32 %v162, 4294901760
      %706 = vmatpush1.msra.mxu0 %v705
      %v707 = vand.u32 %v167, 4294901760
      %708 = vmatprep.subr.mxu0 %v707
      %v709 = vand.u32 %v166, 4294901760
      %710 = vmatpush1.msra.mxu0 %v709
      %v711 = vand.u32 %v171, 4294901760
      %712 = vmatprep.subr.mxu0 %v711
      %v713 = vand.u32 %v170, 4294901760
      %714 = vmatpush1.msra.mxu0 %v713
      %v715 = vand.u32 %v175, 4294901760
      %716 = vmatprep.subr.mxu0 %v715
      %v717 = vand.u32 %v174, 4294901760
      %718 = vmatpush1.msra.mxu0 %v717
      %v719 = vand.u32 %v179, 4294901760
      %720 = vmatprep.subr.mxu0 %v719
      %v721 = vand.u32 %v178, 4294901760
      %722 = vmatpush1.msra.mxu0 %v721
      %v723 = vand.u32 %v183, 4294901760
      %724 = vmatprep.subr.mxu0 %v723
      %v725 = vand.u32 %v182, 4294901760
      %726 = vmatpush1.msra.mxu0 %v725
      %v727 = vand.u32 %v187, 4294901760
      %728 = vmatprep.subr.mxu0 %v727
      %v729 = vand.u32 %v186, 4294901760
      %730 = vmatpush1.msra.mxu0 %v729
      %v731 = vand.u32 %v191, 4294901760
      %732 = vmatprep.subr.mxu0 %v731
      %v733 = vand.u32 %v190, 4294901760
      %734 = vmatpush1.msra.mxu0 %v733
      %v735 = vand.u32 %v195, 4294901760
      %736 = vmatprep.subr.mxu0 %v735
      %v737 = vand.u32 %v194, 4294901760
      %738 = vmatpush1.msra.mxu0 %v737
      %v739 = vand.u32 %v199, 4294901760
      %740 = vmatprep.subr.mxu0 %v739
      %v741 = vand.u32 %v198, 4294901760
      %742 = vmatpush1.msra.mxu0 %v741
      %v743 = vand.u32 %v203, 4294901760
      %744 = vmatprep.subr.mxu0 %v743
      %v745 = vand.u32 %v202, 4294901760
      %746 = vmatpush1.msra.mxu0 %v745
      %747 = vmatprep.subr.mxu0 0.0
      %748 = vmatpush1.msra.mxu0 0.0
      %749 = vmatprep.subr.mxu0 0.0
      %750 = vmatpush1.msra.mxu0 0.0
      %751 = vmatprep.subr.mxu0 0.0
      %752 = vmatpush1.msra.mxu0 0.0
      %753 = vmatprep.subr.mxu0 0.0
      %754 = vmatpush1.msra.mxu0 0.0
      %755 = vmatprep.subr.mxu0 0.0
      %756 = vmatpush1.msra.mxu0 0.0
      %757 = vmatprep.subr.mxu0 0.0
      %758 = vmatpush1.msra.mxu0 0.0
      %759 = vmatprep.subr.mxu0 0.0
      %760 = vmatpush1.msra.mxu0 0.0
      %761 = vmatprep.subr.mxu0 0.0
      %762 = vmatpush1.msra.mxu0 0.0
      %763 = vmatprep.subr.mxu0 0.0
      %764 = vmatpush1.msra.mxu0 0.0
      %765 = vmatprep.subr.mxu0 0.0
      %766 = vmatpush1.msra.mxu0 0.0
      %767 = vmatprep.subr.mxu0 0.0
      %768 = vmatpush1.msra.mxu0 0.0
      %769 = vmatprep.subr.mxu0 0.0
      %770 = vmatpush1.msra.mxu0 0.0
      %771 = vmatprep.subr.mxu0 0.0
      %772 = vmatpush1.msra.mxu0 0.0
      %773 = vmatprep.subr.mxu0 0.0
      %774 = vmatpush1.msra.mxu0 0.0
      %775 = vmatprep.subr.mxu0 0.0
      %776 = vmatpush1.msra.mxu0 0.0
      %777 = vmatprep.subr.mxu0 0.0
      %778 = vmatpush1.msra.mxu0 0.0
      %779 = vmatprep.mubr.f32.mxu0 0.0
      %v780 = vand.u32 %v141, 4294901760
      %v781 = vsub.f32 %v141, %v780
      %v782 = vand.u32 %v781, 4294901760
      %783 = vmatmul.mubr.f32.gmra.mrb[0].mxu0 %v782
      %v784 = vpop.f32.mrb[0].mxu0
      %v785 = vadd.f32 %v679, %v784
      %v786 = vpop.f32.mrb[0].mxu0
      %v787 = vadd.f32 %v681, %v786
      %788 = vdwg.mxu0
      %v789 = vand.u32 %v143, 4294901760
      %v790 = vsub.f32 %v143, %v789
      %v791 = vand.u32 %v790, 4294901760
      %792 = vmatprep.subr.mxu0 %v791
      %v793 = vand.u32 %v142, 4294901760
      %v794 = vsub.f32 %v142, %v793
      %v795 = vand.u32 %v794, 4294901760
      %796 = vmatpush1.msra.mxu0 %v795
      %v797 = vand.u32 %v147, 4294901760
      %v798 = vsub.f32 %v147, %v797
      %v799 = vand.u32 %v798, 4294901760
      %800 = vmatprep.subr.mxu0 %v799
      %v801 = vand.u32 %v146, 4294901760
      %v802 = vsub.f32 %v146, %v801
      %v803 = vand.u32 %v802, 4294901760
      %804 = vmatpush1.msra.mxu0 %v803
      %v805 = vand.u32 %v151, 4294901760
      %v806 = vsub.f32 %v151, %v805
      %v807 = vand.u32 %v806, 4294901760
      %808 = vmatprep.subr.mxu0 %v807
      %v809 = vand.u32 %v150, 4294901760
      %v810 = vsub.f32 %v150, %v809
      %v811 = vand.u32 %v810, 4294901760
      %812 = vmatpush1.msra.mxu0 %v811
      %v813 = vand.u32 %v155, 4294901760
      %v814 = vsub.f32 %v155, %v813
      %v815 = vand.u32 %v814, 4294901760
      %816 = vmatprep.subr.mxu0 %v815
      %v817 = vand.u32 %v154, 4294901760
      %v818 = vsub.f32 %v154, %v817
      %v819 = vand.u32 %v818, 4294901760
      %820 = vmatpush1.msra.mxu0 %v819
      %v821 = vand.u32 %v159, 4294901760
      %v822 = vsub.f32 %v159, %v821
      %v823 = vand.u32 %v822, 4294901760
      %824 = vmatprep.subr.mxu0 %v823
      %v825 = vand.u32 %v158, 4294901760
      %v826 = vsub.f32 %v158, %v825
      %v827 = vand.u32 %v826, 4294901760
      %828 = vmatpush1.msra.mxu0 %v827
      %v829 = vand.u32 %v163, 4294901760
      %v830 = vsub.f32 %v163, %v829
      %v831 = vand.u32 %v830, 4294901760
      %832 = vmatprep.subr.mxu0 %v831
      %v833 = vand.u32 %v162, 4294901760
      %v834 = vsub.f32 %v162, %v833
      %v835 = vand.u32 %v834, 4294901760
      %836 = vmatpush1.msra.mxu0 %v835
      %v837 = vand.u32 %v167, 4294901760
      %v838 = vsub.f32 %v167, %v837
      %v839 = vand.u32 %v838, 4294901760
      %840 = vmatprep.subr.mxu0 %v839
      %v841 = vand.u32 %v166, 4294901760
      %v842 = vsub.f32 %v166, %v841
      %v843 = vand.u32 %v842, 4294901760
      %844 = vmatpush1.msra.mxu0 %v843
      %v845 = vand.u32 %v171, 4294901760
      %v846 = vsub.f32 %v171, %v845
      %v847 = vand.u32 %v846, 4294901760
      %848 = vmatprep.subr.mxu0 %v847
      %v849 = vand.u32 %v170, 4294901760
      %v850 = vsub.f32 %v170, %v849
      %v851 = vand.u32 %v850, 4294901760
      %852 = vmatpush1.msra.mxu0 %v851
      %v853 = vand.u32 %v175, 4294901760
      %v854 = vsub.f32 %v175, %v853
      %v855 = vand.u32 %v854, 4294901760
      %856 = vmatprep.subr.mxu0 %v855
      %v857 = vand.u32 %v174, 4294901760
      %v858 = vsub.f32 %v174, %v857
      %v859 = vand.u32 %v858, 4294901760
      %860 = vmatpush1.msra.mxu0 %v859
      %v861 = vand.u32 %v179, 4294901760
      %v862 = vsub.f32 %v179, %v861
      %v863 = vand.u32 %v862, 4294901760
      %864 = vmatprep.subr.mxu0 %v863
      %v865 = vand.u32 %v178, 4294901760
      %v866 = vsub.f32 %v178, %v865
      %v867 = vand.u32 %v866, 4294901760
      %868 = vmatpush1.msra.mxu0 %v867
      %v869 = vand.u32 %v183, 4294901760
      %v870 = vsub.f32 %v183, %v869
      %v871 = vand.u32 %v870, 4294901760
      %872 = vmatprep.subr.mxu0 %v871
      %v873 = vand.u32 %v182, 4294901760
      %v874 = vsub.f32 %v182, %v873
      %v875 = vand.u32 %v874, 4294901760
      %876 = vmatpush1.msra.mxu0 %v875
      %v877 = vand.u32 %v187, 4294901760
      %v878 = vsub.f32 %v187, %v877
      %v879 = vand.u32 %v878, 4294901760
      %880 = vmatprep.subr.mxu0 %v879
      %v881 = vand.u32 %v186, 4294901760
      %v882 = vsub.f32 %v186, %v881
      %v883 = vand.u32 %v882, 4294901760
      %884 = vmatpush1.msra.mxu0 %v883
      %v885 = vand.u32 %v191, 4294901760
      %v886 = vsub.f32 %v191, %v885
      %v887 = vand.u32 %v886, 4294901760
      %888 = vmatprep.subr.mxu0 %v887
      %v889 = vand.u32 %v190, 4294901760
      %v890 = vsub.f32 %v190, %v889
      %v891 = vand.u32 %v890, 4294901760
      %892 = vmatpush1.msra.mxu0 %v891
      %v893 = vand.u32 %v195, 4294901760
      %v894 = vsub.f32 %v195, %v893
      %v895 = vand.u32 %v894, 4294901760
      %896 = vmatprep.subr.mxu0 %v895
      %v897 = vand.u32 %v194, 4294901760
      %v898 = vsub.f32 %v194, %v897
      %v899 = vand.u32 %v898, 4294901760
      %900 = vmatpush1.msra.mxu0 %v899
      %v901 = vand.u32 %v199, 4294901760
      %v902 = vsub.f32 %v199, %v901
      %v903 = vand.u32 %v902, 4294901760
      %904 = vmatprep.subr.mxu0 %v903
      %v905 = vand.u32 %v198, 4294901760
      %v906 = vsub.f32 %v198, %v905
      %v907 = vand.u32 %v906, 4294901760
      %908 = vmatpush1.msra.mxu0 %v907
      %v909 = vand.u32 %v203, 4294901760
      %v910 = vsub.f32 %v203, %v909
      %v911 = vand.u32 %v910, 4294901760
      %912 = vmatprep.subr.mxu0 %v911
      %v913 = vand.u32 %v202, 4294901760
      %v914 = vsub.f32 %v202, %v913
      %v915 = vand.u32 %v914, 4294901760
      %916 = vmatpush1.msra.mxu0 %v915
      %917 = vmatprep.subr.mxu0 0.0
      %918 = vmatpush1.msra.mxu0 0.0
      %919 = vmatprep.subr.mxu0 0.0
      %920 = vmatpush1.msra.mxu0 0.0
      %921 = vmatprep.subr.mxu0 0.0
      %922 = vmatpush1.msra.mxu0 0.0
      %923 = vmatprep.subr.mxu0 0.0
      %924 = vmatpush1.msra.mxu0 0.0
      %925 = vmatprep.subr.mxu0 0.0
      %926 = vmatpush1.msra.mxu0 0.0
      %927 = vmatprep.subr.mxu0 0.0
      %928 = vmatpush1.msra.mxu0 0.0
      %929 = vmatprep.subr.mxu0 0.0
      %930 = vmatpush1.msra.mxu0 0.0
      %931 = vmatprep.subr.mxu0 0.0
      %932 = vmatpush1.msra.mxu0 0.0
      %933 = vmatprep.subr.mxu0 0.0
      %934 = vmatpush1.msra.mxu0 0.0
      %935 = vmatprep.subr.mxu0 0.0
      %936 = vmatpush1.msra.mxu0 0.0
      %937 = vmatprep.subr.mxu0 0.0
      %938 = vmatpush1.msra.mxu0 0.0
      %939 = vmatprep.subr.mxu0 0.0
      %940 = vmatpush1.msra.mxu0 0.0
      %941 = vmatprep.subr.mxu0 0.0
      %942 = vmatpush1.msra.mxu0 0.0
      %943 = vmatprep.subr.mxu0 0.0
      %944 = vmatpush1.msra.mxu0 0.0
      %945 = vmatprep.subr.mxu0 0.0
      %946 = vmatpush1.msra.mxu0 0.0
      %947 = vmatprep.subr.mxu0 0.0
      %948 = vmatpush1.msra.mxu0 0.0
      %949 = vmatprep.mubr.f32.mxu0 0.0
      %v950 = vand.u32 %v141, 4294901760
      %951 = vmatmul.mubr.f32.gmra.mrb[0].mxu0 %v950
      %v952 = vpop.f32.mrb[0].mxu0
      %v953 = vadd.f32 %v785, %v952
      %v954 = vpop.f32.mrb[0].mxu0
      %v955 = vadd.f32 %v787, %v954
      %956 = vdwg.mxu0
      %v957 = vand.u32 %v143, 4294901760
      %958 = vmatprep.subr.mxu0 %v957
      %v959 = vand.u32 %v142, 4294901760
      %960 = vmatpush1.msra.mxu0 %v959
      %v961 = vand.u32 %v147, 4294901760
      %962 = vmatprep.subr.mxu0 %v961
      %v963 = vand.u32 %v146, 4294901760
      %964 = vmatpush1.msra.mxu0 %v963
      %v965 = vand.u32 %v151, 4294901760
      %966 = vmatprep.subr.mxu0 %v965
      %v967 = vand.u32 %v150, 4294901760
      %968 = vmatpush1.msra.mxu0 %v967
      %v969 = vand.u32 %v155, 4294901760
      %970 = vmatprep.subr.mxu0 %v969
      %v971 = vand.u32 %v154, 4294901760
      %972 = vmatpush1.msra.mxu0 %v971
      %v973 = vand.u32 %v159, 4294901760
      %974 = vmatprep.subr.mxu0 %v973
      %v975 = vand.u32 %v158, 4294901760
      %976 = vmatpush1.msra.mxu0 %v975
      %v977 = vand.u32 %v163, 4294901760
      %978 = vmatprep.subr.mxu0 %v977
      %v979 = vand.u32 %v162, 4294901760
      %980 = vmatpush1.msra.mxu0 %v979
      %v981 = vand.u32 %v167, 4294901760
      %982 = vmatprep.subr.mxu0 %v981
      %v983 = vand.u32 %v166, 4294901760
      %984 = vmatpush1.msra.mxu0 %v983
      %v985 = vand.u32 %v171, 4294901760
      %986 = vmatprep.subr.mxu0 %v985
      %v987 = vand.u32 %v170, 4294901760
      %988 = vmatpush1.msra.mxu0 %v987
      %v989 = vand.u32 %v175, 4294901760
      %990 = vmatprep.subr.mxu0 %v989
      %v991 = vand.u32 %v174, 4294901760
      %992 = vmatpush1.msra.mxu0 %v991
      %v993 = vand.u32 %v179, 4294901760
      %994 = vmatprep.subr.mxu0 %v993
      %v995 = vand.u32 %v178, 4294901760
      %996 = vmatpush1.msra.mxu0 %v995
      %v997 = vand.u32 %v183, 4294901760
      %998 = vmatprep.subr.mxu0 %v997
      %v999 = vand.u32 %v182, 4294901760
      %1000 = vmatpush1.msra.mxu0 %v999
      %v1001 = vand.u32 %v187, 4294901760
      %1002 = vmatprep.subr.mxu0 %v1001
      %v1003 = vand.u32 %v186, 4294901760
      %1004 = vmatpush1.msra.mxu0 %v1003
      %v1005 = vand.u32 %v191, 4294901760
      %1006 = vmatprep.subr.mxu0 %v1005
      %v1007 = vand.u32 %v190, 4294901760
      %1008 = vmatpush1.msra.mxu0 %v1007
      %v1009 = vand.u32 %v195, 4294901760
      %1010 = vmatprep.subr.mxu0 %v1009
      %v1011 = vand.u32 %v194, 4294901760
      %1012 = vmatpush1.msra.mxu0 %v1011
      %v1013 = vand.u32 %v199, 4294901760
      %1014 = vmatprep.subr.mxu0 %v1013
      %v1015 = vand.u32 %v198, 4294901760
      %1016 = vmatpush1.msra.mxu0 %v1015
      %v1017 = vand.u32 %v203, 4294901760
      %1018 = vmatprep.subr.mxu0 %v1017
      %v1019 = vand.u32 %v202, 4294901760
      %1020 = vmatpush1.msra.mxu0 %v1019
      %1021 = vmatprep.subr.mxu0 0.0
      %1022 = vmatpush1.msra.mxu0 0.0
      %1023 = vmatprep.subr.mxu0 0.0
      %1024 = vmatpush1.msra.mxu0 0.0
      %1025 = vmatprep.subr.mxu0 0.0
      %1026 = vmatpush1.msra.mxu0 0.0
      %1027 = vmatprep.subr.mxu0 0.0
      %1028 = vmatpush1.msra.mxu0 0.0
      %1029 = vmatprep.subr.mxu0 0.0
      %1030 = vmatpush1.msra.mxu0 0.0
      %1031 = vmatprep.subr.mxu0 0.0
      %1032 = vmatpush1.msra.mxu0 0.0
      %1033 = vmatprep.subr.mxu0 0.0
      %1034 = vmatpush1.msra.mxu0 0.0
      %1035 = vmatprep.subr.mxu0 0.0
      %1036 = vmatpush1.msra.mxu0 0.0
      %1037 = vmatprep.subr.mxu0 0.0
      %1038 = vmatpush1.msra.mxu0 0.0
      %1039 = vmatprep.subr.mxu0 0.0
      %1040 = vmatpush1.msra.mxu0 0.0
      %1041 = vmatprep.subr.mxu0 0.0
      %1042 = vmatpush1.msra.mxu0 0.0
      %1043 = vmatprep.subr.mxu0 0.0
      %1044 = vmatpush1.msra.mxu0 0.0
      %1045 = vmatprep.subr.mxu0 0.0
      %1046 = vmatpush1.msra.mxu0 0.0
      %1047 = vmatprep.subr.mxu0 0.0
      %1048 = vmatpush1.msra.mxu0 0.0
      %1049 = vmatprep.subr.mxu0 0.0
      %1050 = vmatpush1.msra.mxu0 0.0
      %1051 = vmatprep.subr.mxu0 0.0
      %1052 = vmatpush1.msra.mxu0 0.0
      %1053 = vmatprep.mubr.f32.mxu0 0.0
      %v1054 = vand.u32 %v141, 4294901760
      %1055 = vmatmul.mubr.f32.gmra.mrb[0].mxu0 %v1054
      %v1056 = vpop.f32.mrb[0].mxu0
      %v1057 = vadd.f32 %v953, %v1056
      %v1058 = vpop.f32.mrb[0].mxu0
      %v1059 = vadd.f32 %v955, %v1058
      %1060 = vdwg.mxu0
      %v1061 = vand.u32 %v145, 4294901760
      %1062 = vmatprep.subr.mxu0 %v1061
      %v1063 = vand.u32 %v144, 4294901760
      %1064 = vmatpush1.msra.mxu0 %v1063
      %v1065 = vand.u32 %v149, 4294901760
      %1066 = vmatprep.subr.mxu0 %v1065
      %v1067 = vand.u32 %v148, 4294901760
      %1068 = vmatpush1.msra.mxu0 %v1067
      %v1069 = vand.u32 %v153, 4294901760
      %1070 = vmatprep.subr.mxu0 %v1069
      %v1071 = vand.u32 %v152, 4294901760
      %1072 = vmatpush1.msra.mxu0 %v1071
      %v1073 = vand.u32 %v157, 4294901760
      %1074 = vmatprep.subr.mxu0 %v1073
      %v1075 = vand.u32 %v156, 4294901760
      %1076 = vmatpush1.msra.mxu0 %v1075
      %v1077 = vand.u32 %v161, 4294901760
      %1078 = vmatprep.subr.mxu0 %v1077
      %v1079 = vand.u32 %v160, 4294901760
      %1080 = vmatpush1.msra.mxu0 %v1079
      %v1081 = vand.u32 %v165, 4294901760
      %1082 = vmatprep.subr.mxu0 %v1081
      %v1083 = vand.u32 %v164, 4294901760
      %1084 = vmatpush1.msra.mxu0 %v1083
      %v1085 = vand.u32 %v169, 4294901760
      %1086 = vmatprep.subr.mxu0 %v1085
      %v1087 = vand.u32 %v168, 4294901760
      %1088 = vmatpush1.msra.mxu0 %v1087
      %v1089 = vand.u32 %v173, 4294901760
      %1090 = vmatprep.subr.mxu0 %v1089
      %v1091 = vand.u32 %v172, 4294901760
      %1092 = vmatpush1.msra.mxu0 %v1091
      %v1093 = vand.u32 %v177, 4294901760
      %1094 = vmatprep.subr.mxu0 %v1093
      %v1095 = vand.u32 %v176, 4294901760
      %1096 = vmatpush1.msra.mxu0 %v1095
      %v1097 = vand.u32 %v181, 4294901760
      %1098 = vmatprep.subr.mxu0 %v1097
      %v1099 = vand.u32 %v180, 4294901760
      %1100 = vmatpush1.msra.mxu0 %v1099
      %v1101 = vand.u32 %v185, 4294901760
      %1102 = vmatprep.subr.mxu0 %v1101
      %v1103 = vand.u32 %v184, 4294901760
      %1104 = vmatpush1.msra.mxu0 %v1103
      %v1105 = vand.u32 %v189, 4294901760
      %1106 = vmatprep.subr.mxu0 %v1105
      %v1107 = vand.u32 %v188, 4294901760
      %1108 = vmatpush1.msra.mxu0 %v1107
      %v1109 = vand.u32 %v193, 4294901760
      %1110 = vmatprep.subr.mxu0 %v1109
      %v1111 = vand.u32 %v192, 4294901760
      %1112 = vmatpush1.msra.mxu0 %v1111
      %v1113 = vand.u32 %v197, 4294901760
      %1114 = vmatprep.subr.mxu0 %v1113
      %v1115 = vand.u32 %v196, 4294901760
      %1116 = vmatpush1.msra.mxu0 %v1115
      %v1117 = vand.u32 %v201, 4294901760
      %1118 = vmatprep.subr.mxu0 %v1117
      %v1119 = vand.u32 %v200, 4294901760
      %1120 = vmatpush1.msra.mxu0 %v1119
      %v1121 = vand.u32 %v205, 4294901760
      %1122 = vmatprep.subr.mxu0 %v1121
      %v1123 = vand.u32 %v204, 4294901760
      %1124 = vmatpush1.msra.mxu0 %v1123
      %1125 = vmatprep.subr.mxu0 0.0
      %1126 = vmatpush1.msra.mxu0 0.0
      %1127 = vmatprep.subr.mxu0 0.0
      %1128 = vmatpush1.msra.mxu0 0.0
      %1129 = vmatprep.subr.mxu0 0.0
      %1130 = vmatpush1.msra.mxu0 0.0
      %1131 = vmatprep.subr.mxu0 0.0
      %1132 = vmatpush1.msra.mxu0 0.0
      %1133 = vmatprep.subr.mxu0 0.0
      %1134 = vmatpush1.msra.mxu0 0.0
      %1135 = vmatprep.subr.mxu0 0.0
      %1136 = vmatpush1.msra.mxu0 0.0
      %1137 = vmatprep.subr.mxu0 0.0
      %1138 = vmatpush1.msra.mxu0 0.0
      %1139 = vmatprep.subr.mxu0 0.0
      %1140 = vmatpush1.msra.mxu0 0.0
      %1141 = vmatprep.subr.mxu0 0.0
      %1142 = vmatpush1.msra.mxu0 0.0
      %1143 = vmatprep.subr.mxu0 0.0
      %1144 = vmatpush1.msra.mxu0 0.0
      %1145 = vmatprep.subr.mxu0 0.0
      %1146 = vmatpush1.msra.mxu0 0.0
      %1147 = vmatprep.subr.mxu0 0.0
      %1148 = vmatpush1.msra.mxu0 0.0
      %1149 = vmatprep.subr.mxu0 0.0
      %1150 = vmatpush1.msra.mxu0 0.0
      %1151 = vmatprep.subr.mxu0 0.0
      %1152 = vmatpush1.msra.mxu0 0.0
      %1153 = vmatprep.subr.mxu0 0.0
      %1154 = vmatpush1.msra.mxu0 0.0
      %1155 = vmatprep.subr.mxu0 0.0
      %1156 = vmatpush1.msra.mxu0 0.0
      %1157 = vmatprep.mubr.f32.mxu0 0.0
      %v1158 = vand.u32 %v141, 4294901760
      %v1159 = vsub.f32 %v141, %v1158
      %v1160 = vand.u32 %v1159, 4294901760
      %v1161 = vsub.f32 %v1159, %v1160
      %v1162 = vand.u32 %v1161, 4294901760
      %1163 = vmatmul.mubr.f32.gmra.mrb[0].mxu0 %v1162
      %v1164 = vpop.f32.mrb[0].mxu0
      %v1165 = vadd.f32 0.0, %v1164
      %v1166 = vpop.f32.mrb[0].mxu0
      %v1167 = vadd.f32 0.0, %v1166
      %1168 = vdwg.mxu0
      %v1169 = vand.u32 %v145, 4294901760
      %v1170 = vsub.f32 %v145, %v1169
      %v1171 = vand.u32 %v1170, 4294901760
      %v1172 = vsub.f32 %v1170, %v1171
      %v1173 = vand.u32 %v1172, 4294901760
      %1174 = vmatprep.subr.mxu0 %v1173
      %v1175 = vand.u32 %v144, 4294901760
      %v1176 = vsub.f32 %v144, %v1175
      %v1177 = vand.u32 %v1176, 4294901760
      %v1178 = vsub.f32 %v1176, %v1177
      %v1179 = vand.u32 %v1178, 4294901760
      %1180 = vmatpush1.msra.mxu0 %v1179
      %v1181 = vand.u32 %v149, 4294901760
      %v1182 = vsub.f32 %v149, %v1181
      %v1183 = vand.u32 %v1182, 4294901760
      %v1184 = vsub.f32 %v1182, %v1183
      %v1185 = vand.u32 %v1184, 4294901760
      %1186 = vmatprep.subr.mxu0 %v1185
      %v1187 = vand.u32 %v148, 4294901760
      %v1188 = vsub.f32 %v148, %v1187
      %v1189 = vand.u32 %v1188, 4294901760
      %v1190 = vsub.f32 %v1188, %v1189
      %v1191 = vand.u32 %v1190, 4294901760
      %1192 = vmatpush1.msra.mxu0 %v1191
      %v1193 = vand.u32 %v153, 4294901760
      %v1194 = vsub.f32 %v153, %v1193
      %v1195 = vand.u32 %v1194, 4294901760
      %v1196 = vsub.f32 %v1194, %v1195
      %v1197 = vand.u32 %v1196, 4294901760
      %1198 = vmatprep.subr.mxu0 %v1197
      %v1199 = vand.u32 %v152, 4294901760
      %v1200 = vsub.f32 %v152, %v1199
      %v1201 = vand.u32 %v1200, 4294901760
      %v1202 = vsub.f32 %v1200, %v1201
      %v1203 = vand.u32 %v1202, 4294901760
      %1204 = vmatpush1.msra.mxu0 %v1203
      %v1205 = vand.u32 %v157, 4294901760
      %v1206 = vsub.f32 %v157, %v1205
      %v1207 = vand.u32 %v1206, 4294901760
      %v1208 = vsub.f32 %v1206, %v1207
      %v1209 = vand.u32 %v1208, 4294901760
      %1210 = vmatprep.subr.mxu0 %v1209
      %v1211 = vand.u32 %v156, 4294901760
      %v1212 = vsub.f32 %v156, %v1211
      %v1213 = vand.u32 %v1212, 4294901760
      %v1214 = vsub.f32 %v1212, %v1213
      %v1215 = vand.u32 %v1214, 4294901760
      %1216 = vmatpush1.msra.mxu0 %v1215
      %v1217 = vand.u32 %v161, 4294901760
      %v1218 = vsub.f32 %v161, %v1217
      %v1219 = vand.u32 %v1218, 4294901760
      %v1220 = vsub.f32 %v1218, %v1219
      %v1221 = vand.u32 %v1220, 4294901760
      %1222 = vmatprep.subr.mxu0 %v1221
      %v1223 = vand.u32 %v160, 4294901760
      %v1224 = vsub.f32 %v160, %v1223
      %v1225 = vand.u32 %v1224, 4294901760
      %v1226 = vsub.f32 %v1224, %v1225
      %v1227 = vand.u32 %v1226, 4294901760
      %1228 = vmatpush1.msra.mxu0 %v1227
      %v1229 = vand.u32 %v165, 4294901760
      %v1230 = vsub.f32 %v165, %v1229
      %v1231 = vand.u32 %v1230, 4294901760
      %v1232 = vsub.f32 %v1230, %v1231
      %v1233 = vand.u32 %v1232, 4294901760
      %1234 = vmatprep.subr.mxu0 %v1233
      %v1235 = vand.u32 %v164, 4294901760
      %v1236 = vsub.f32 %v164, %v1235
      %v1237 = vand.u32 %v1236, 4294901760
      %v1238 = vsub.f32 %v1236, %v1237
      %v1239 = vand.u32 %v1238, 4294901760
      %1240 = vmatpush1.msra.mxu0 %v1239
      %v1241 = vand.u32 %v169, 4294901760
      %v1242 = vsub.f32 %v169, %v1241
      %v1243 = vand.u32 %v1242, 4294901760
      %v1244 = vsub.f32 %v1242, %v1243
      %v1245 = vand.u32 %v1244, 4294901760
      %1246 = vmatprep.subr.mxu0 %v1245
      %v1247 = vand.u32 %v168, 4294901760
      %v1248 = vsub.f32 %v168, %v1247
      %v1249 = vand.u32 %v1248, 4294901760
      %v1250 = vsub.f32 %v1248, %v1249
      %v1251 = vand.u32 %v1250, 4294901760
      %1252 = vmatpush1.msra.mxu0 %v1251
      %v1253 = vand.u32 %v173, 4294901760
      %v1254 = vsub.f32 %v173, %v1253
      %v1255 = vand.u32 %v1254, 4294901760
      %v1256 = vsub.f32 %v1254, %v1255
      %v1257 = vand.u32 %v1256, 4294901760
      %1258 = vmatprep.subr.mxu0 %v1257
      %v1259 = vand.u32 %v172, 4294901760
      %v1260 = vsub.f32 %v172, %v1259
      %v1261 = vand.u32 %v1260, 4294901760
      %v1262 = vsub.f32 %v1260, %v1261
      %v1263 = vand.u32 %v1262, 4294901760
      %1264 = vmatpush1.msra.mxu0 %v1263
      %v1265 = vand.u32 %v177, 4294901760
      %v1266 = vsub.f32 %v177, %v1265
      %v1267 = vand.u32 %v1266, 4294901760
      %v1268 = vsub.f32 %v1266, %v1267
      %v1269 = vand.u32 %v1268, 4294901760
      %1270 = vmatprep.subr.mxu0 %v1269
      %v1271 = vand.u32 %v176, 4294901760
      %v1272 = vsub.f32 %v176, %v1271
      %v1273 = vand.u32 %v1272, 4294901760
      %v1274 = vsub.f32 %v1272, %v1273
      %v1275 = vand.u32 %v1274, 4294901760
      %1276 = vmatpush1.msra.mxu0 %v1275
      %v1277 = vand.u32 %v181, 4294901760
      %v1278 = vsub.f32 %v181, %v1277
      %v1279 = vand.u32 %v1278, 4294901760
      %v1280 = vsub.f32 %v1278, %v1279
      %v1281 = vand.u32 %v1280, 4294901760
      %1282 = vmatprep.subr.mxu0 %v1281
      %v1283 = vand.u32 %v180, 4294901760
      %v1284 = vsub.f32 %v180, %v1283
      %v1285 = vand.u32 %v1284, 4294901760
      %v1286 = vsub.f32 %v1284, %v1285
      %v1287 = vand.u32 %v1286, 4294901760
      %1288 = vmatpush1.msra.mxu0 %v1287
      %v1289 = vand.u32 %v185, 4294901760
      %v1290 = vsub.f32 %v185, %v1289
      %v1291 = vand.u32 %v1290, 4294901760
      %v1292 = vsub.f32 %v1290, %v1291
      %v1293 = vand.u32 %v1292, 4294901760
      %1294 = vmatprep.subr.mxu0 %v1293
      %v1295 = vand.u32 %v184, 4294901760
      %v1296 = vsub.f32 %v184, %v1295
      %v1297 = vand.u32 %v1296, 4294901760
      %v1298 = vsub.f32 %v1296, %v1297
      %v1299 = vand.u32 %v1298, 4294901760
      %1300 = vmatpush1.msra.mxu0 %v1299
      %v1301 = vand.u32 %v189, 4294901760
      %v1302 = vsub.f32 %v189, %v1301
      %v1303 = vand.u32 %v1302, 4294901760
      %v1304 = vsub.f32 %v1302, %v1303
      %v1305 = vand.u32 %v1304, 4294901760
      %1306 = vmatprep.subr.mxu0 %v1305
      %v1307 = vand.u32 %v188, 4294901760
      %v1308 = vsub.f32 %v188, %v1307
      %v1309 = vand.u32 %v1308, 4294901760
      %v1310 = vsub.f32 %v1308, %v1309
      %v1311 = vand.u32 %v1310, 4294901760
      %1312 = vmatpush1.msra.mxu0 %v1311
      %v1313 = vand.u32 %v193, 4294901760
      %v1314 = vsub.f32 %v193, %v1313
      %v1315 = vand.u32 %v1314, 4294901760
      %v1316 = vsub.f32 %v1314, %v1315
      %v1317 = vand.u32 %v1316, 4294901760
      %1318 = vmatprep.subr.mxu0 %v1317
      %v1319 = vand.u32 %v192, 4294901760
      %v1320 = vsub.f32 %v192, %v1319
      %v1321 = vand.u32 %v1320, 4294901760
      %v1322 = vsub.f32 %v1320, %v1321
      %v1323 = vand.u32 %v1322, 4294901760
      %1324 = vmatpush1.msra.mxu0 %v1323
      %v1325 = vand.u32 %v197, 4294901760
      %v1326 = vsub.f32 %v197, %v1325
      %v1327 = vand.u32 %v1326, 4294901760
      %v1328 = vsub.f32 %v1326, %v1327
      %v1329 = vand.u32 %v1328, 4294901760
      %1330 = vmatprep.subr.mxu0 %v1329
      %v1331 = vand.u32 %v196, 4294901760
      %v1332 = vsub.f32 %v196, %v1331
      %v1333 = vand.u32 %v1332, 4294901760
      %v1334 = vsub.f32 %v1332, %v1333
      %v1335 = vand.u32 %v1334, 4294901760
      %1336 = vmatpush1.msra.mxu0 %v1335
      %v1337 = vand.u32 %v201, 4294901760
      %v1338 = vsub.f32 %v201, %v1337
      %v1339 = vand.u32 %v1338, 4294901760
      %v1340 = vsub.f32 %v1338, %v1339
      %v1341 = vand.u32 %v1340, 4294901760
      %1342 = vmatprep.subr.mxu0 %v1341
      %v1343 = vand.u32 %v200, 4294901760
      %v1344 = vsub.f32 %v200, %v1343
      %v1345 = vand.u32 %v1344, 4294901760
      %v1346 = vsub.f32 %v1344, %v1345
      %v1347 = vand.u32 %v1346, 4294901760
      %1348 = vmatpush1.msra.mxu0 %v1347
      %v1349 = vand.u32 %v205, 4294901760
      %v1350 = vsub.f32 %v205, %v1349
      %v1351 = vand.u32 %v1350, 4294901760
      %v1352 = vsub.f32 %v1350, %v1351
      %v1353 = vand.u32 %v1352, 4294901760
      %1354 = vmatprep.subr.mxu0 %v1353
      %v1355 = vand.u32 %v204, 4294901760
      %v1356 = vsub.f32 %v204, %v1355
      %v1357 = vand.u32 %v1356, 4294901760
      %v1358 = vsub.f32 %v1356, %v1357
      %v1359 = vand.u32 %v1358, 4294901760
      %1360 = vmatpush1.msra.mxu0 %v1359
      %1361 = vmatprep.subr.mxu0 0.0
      %1362 = vmatpush1.msra.mxu0 0.0
      %1363 = vmatprep.subr.mxu0 0.0
      %1364 = vmatpush1.msra.mxu0 0.0
      %1365 = vmatprep.subr.mxu0 0.0
      %1366 = vmatpush1.msra.mxu0 0.0
      %1367 = vmatprep.subr.mxu0 0.0
      %1368 = vmatpush1.msra.mxu0 0.0
      %1369 = vmatprep.subr.mxu0 0.0
      %1370 = vmatpush1.msra.mxu0 0.0
      %1371 = vmatprep.subr.mxu0 0.0
      %1372 = vmatpush1.msra.mxu0 0.0
      %1373 = vmatprep.subr.mxu0 0.0
      %1374 = vmatpush1.msra.mxu0 0.0
      %1375 = vmatprep.subr.mxu0 0.0
      %1376 = vmatpush1.msra.mxu0 0.0
      %1377 = vmatprep.subr.mxu0 0.0
      %1378 = vmatpush1.msra.mxu0 0.0
      %1379 = vmatprep.subr.mxu0 0.0
      %1380 = vmatpush1.msra.mxu0 0.0
      %1381 = vmatprep.subr.mxu0 0.0
      %1382 = vmatpush1.msra.mxu0 0.0
      %1383 = vmatprep.subr.mxu0 0.0
      %1384 = vmatpush1.msra.mxu0 0.0
      %1385 = vmatprep.subr.mxu0 0.0
      %1386 = vmatpush1.msra.mxu0 0.0
      %1387 = vmatprep.subr.mxu0 0.0
      %1388 = vmatpush1.msra.mxu0 0.0
      %1389 = vmatprep.subr.mxu0 0.0
      %1390 = vmatpush1.msra.mxu0 0.0
      %1391 = vmatprep.subr.mxu0 0.0
      %1392 = vmatpush1.msra.mxu0 0.0
      %1393 = vmatprep.mubr.f32.mxu0 0.0
      %v1394 = vand.u32 %v141, 4294901760
      %1395 = vmatmul.mubr.f32.gmra.mrb[0].mxu0 %v1394
      %v1396 = vpop.f32.mrb[0].mxu0
      %v1397 = vadd.f32 %v1165, %v1396
      %v1398 = vpop.f32.mrb[0].mxu0
      %v1399 = vadd.f32 %v1167, %v1398
      %1400 = vdwg.mxu0
      %v1401 = vand.u32 %v145, 4294901760
      %v1402 = vsub.f32 %v145, %v1401
      %1403 = vmatprep.subr.mxu0 %v1402
      %v1404 = vand.u32 %v144, 4294901760
      %v1405 = vsub.f32 %v144, %v1404
      %1406 = vmatpush1.msra.mxu0 %v1405
      %v1407 = vand.u32 %v149, 4294901760
      %v1408 = vsub.f32 %v149, %v1407
      %1409 = vmatprep.subr.mxu0 %v1408
      %v1410 = vand.u32 %v148, 4294901760
      %v1411 = vsub.f32 %v148, %v1410
      %1412 = vmatpush1.msra.mxu0 %v1411
      %v1413 = vand.u32 %v153, 4294901760
      %v1414 = vsub.f32 %v153, %v1413
      %1415 = vmatprep.subr.mxu0 %v1414
      %v1416 = vand.u32 %v152, 4294901760
      %v1417 = vsub.f32 %v152, %v1416
      %1418 = vmatpush1.msra.mxu0 %v1417
      %v1419 = vand.u32 %v157, 4294901760
      %v1420 = vsub.f32 %v157, %v1419
      %1421 = vmatprep.subr.mxu0 %v1420
      %v1422 = vand.u32 %v156, 4294901760
      %v1423 = vsub.f32 %v156, %v1422
      %1424 = vmatpush1.msra.mxu0 %v1423
      %v1425 = vand.u32 %v161, 4294901760
      %v1426 = vsub.f32 %v161, %v1425
      %1427 = vmatprep.subr.mxu0 %v1426
      %v1428 = vand.u32 %v160, 4294901760
      %v1429 = vsub.f32 %v160, %v1428
      %1430 = vmatpush1.msra.mxu0 %v1429
      %v1431 = vand.u32 %v165, 4294901760
      %v1432 = vsub.f32 %v165, %v1431
      %1433 = vmatprep.subr.mxu0 %v1432
      %v1434 = vand.u32 %v164, 4294901760
      %v1435 = vsub.f32 %v164, %v1434
      %1436 = vmatpush1.msra.mxu0 %v1435
      %v1437 = vand.u32 %v169, 4294901760
      %v1438 = vsub.f32 %v169, %v1437
      %1439 = vmatprep.subr.mxu0 %v1438
      %v1440 = vand.u32 %v168, 4294901760
      %v1441 = vsub.f32 %v168, %v1440
      %1442 = vmatpush1.msra.mxu0 %v1441
      %v1443 = vand.u32 %v173, 4294901760
      %v1444 = vsub.f32 %v173, %v1443
      %1445 = vmatprep.subr.mxu0 %v1444
      %v1446 = vand.u32 %v172, 4294901760
      %v1447 = vsub.f32 %v172, %v1446
      %1448 = vmatpush1.msra.mxu0 %v1447
      %v1449 = vand.u32 %v177, 4294901760
      %v1450 = vsub.f32 %v177, %v1449
      %1451 = vmatprep.subr.mxu0 %v1450
      %v1452 = vand.u32 %v176, 4294901760
      %v1453 = vsub.f32 %v176, %v1452
      %1454 = vmatpush1.msra.mxu0 %v1453
      %v1455 = vand.u32 %v181, 4294901760
      %v1456 = vsub.f32 %v181, %v1455
      %1457 = vmatprep.subr.mxu0 %v1456
      %v1458 = vand.u32 %v180, 4294901760
      %v1459 = vsub.f32 %v180, %v1458
      %1460 = vmatpush1.msra.mxu0 %v1459
      %v1461 = vand.u32 %v185, 4294901760
      %v1462 = vsub.f32 %v185, %v1461
      %1463 = vmatprep.subr.mxu0 %v1462
      %v1464 = vand.u32 %v184, 4294901760
      %v1465 = vsub.f32 %v184, %v1464
      %1466 = vmatpush1.msra.mxu0 %v1465
      %v1467 = vand.u32 %v189, 4294901760
      %v1468 = vsub.f32 %v189, %v1467
      %1469 = vmatprep.subr.mxu0 %v1468
      %v1470 = vand.u32 %v188, 4294901760
      %v1471 = vsub.f32 %v188, %v1470
      %1472 = vmatpush1.msra.mxu0 %v1471
      %v1473 = vand.u32 %v193, 4294901760
      %v1474 = vsub.f32 %v193, %v1473
      %1475 = vmatprep.subr.mxu0 %v1474
      %v1476 = vand.u32 %v192, 4294901760
      %v1477 = vsub.f32 %v192, %v1476
      %1478 = vmatpush1.msra.mxu0 %v1477
      %v1479 = vand.u32 %v197, 4294901760
      %v1480 = vsub.f32 %v197, %v1479
      %1481 = vmatprep.subr.mxu0 %v1480
      %v1482 = vand.u32 %v196, 4294901760
      %v1483 = vsub.f32 %v196, %v1482
      %1484 = vmatpush1.msra.mxu0 %v1483
      %v1485 = vand.u32 %v201, 4294901760
      %v1486 = vsub.f32 %v201, %v1485
      %1487 = vmatprep.subr.mxu0 %v1486
      %v1488 = vand.u32 %v200, 4294901760
      %v1489 = vsub.f32 %v200, %v1488
      %1490 = vmatpush1.msra.mxu0 %v1489
      %v1491 = vand.u32 %v205, 4294901760
      %v1492 = vsub.f32 %v205, %v1491
      %1493 = vmatprep.subr.mxu0 %v1492
      %v1494 = vand.u32 %v204, 4294901760
      %v1495 = vsub.f32 %v204, %v1494
      %1496 = vmatpush1.msra.mxu0 %v1495
      %1497 = vmatprep.subr.mxu0 0.0
      %1498 = vmatpush1.msra.mxu0 0.0
      %1499 = vmatprep.subr.mxu0 0.0
      %1500 = vmatpush1.msra.mxu0 0.0
      %1501 = vmatprep.subr.mxu0 0.0
      %1502 = vmatpush1.msra.mxu0 0.0
      %1503 = vmatprep.subr.mxu0 0.0
      %1504 = vmatpush1.msra.mxu0 0.0
      %1505 = vmatprep.subr.mxu0 0.0
      %1506 = vmatpush1.msra.mxu0 0.0
      %1507 = vmatprep.subr.mxu0 0.0
      %1508 = vmatpush1.msra.mxu0 0.0
      %1509 = vmatprep.subr.mxu0 0.0
      %1510 = vmatpush1.msra.mxu0 0.0
      %1511 = vmatprep.subr.mxu0 0.0
      %1512 = vmatpush1.msra.mxu0 0.0
      %1513 = vmatprep.subr.mxu0 0.0
      %1514 = vmatpush1.msra.mxu0 0.0
      %1515 = vmatprep.subr.mxu0 0.0
      %1516 = vmatpush1.msra.mxu0 0.0
      %1517 = vmatprep.subr.mxu0 0.0
      %1518 = vmatpush1.msra.mxu0 0.0
      %1519 = vmatprep.subr.mxu0 0.0
      %1520 = vmatpush1.msra.mxu0 0.0
      %1521 = vmatprep.subr.mxu0 0.0
      %1522 = vmatpush1.msra.mxu0 0.0
      %1523 = vmatprep.subr.mxu0 0.0
      %1524 = vmatpush1.msra.mxu0 0.0
      %1525 = vmatprep.subr.mxu0 0.0
      %1526 = vmatpush1.msra.mxu0 0.0
      %1527 = vmatprep.subr.mxu0 0.0
      %1528 = vmatpush1.msra.mxu0 0.0
      %1529 = vmatprep.mubr.f32.mxu0 0.0
      %v1530 = vand.u32 %v141, 4294901760
      %v1531 = vsub.f32 %v141, %v1530
      %1532 = vmatmul.mubr.f32.gmra.mrb[0].mxu0 %v1531
      %v1533 = vpop.f32.mrb[0].mxu0
      %v1534 = vadd.f32 %v1397, %v1533
      %v1535 = vpop.f32.mrb[0].mxu0
      %v1536 = vadd.f32 %v1399, %v1535
      %1537 = vdwg.mxu0
      %v1538 = vand.u32 %v145, 4294901760
      %1539 = vmatprep.subr.mxu0 %v1538
      %v1540 = vand.u32 %v144, 4294901760
      %1541 = vmatpush1.msra.mxu0 %v1540
      %v1542 = vand.u32 %v149, 4294901760
      %1543 = vmatprep.subr.mxu0 %v1542
      %v1544 = vand.u32 %v148, 4294901760
      %1545 = vmatpush1.msra.mxu0 %v1544
      %v1546 = vand.u32 %v153, 4294901760
      %1547 = vmatprep.subr.mxu0 %v1546
      %v1548 = vand.u32 %v152, 4294901760
      %1549 = vmatpush1.msra.mxu0 %v1548
      %v1550 = vand.u32 %v157, 4294901760
      %1551 = vmatprep.subr.mxu0 %v1550
      %v1552 = vand.u32 %v156, 4294901760
      %1553 = vmatpush1.msra.mxu0 %v1552
      %v1554 = vand.u32 %v161, 4294901760
      %1555 = vmatprep.subr.mxu0 %v1554
      %v1556 = vand.u32 %v160, 4294901760
      %1557 = vmatpush1.msra.mxu0 %v1556
      %v1558 = vand.u32 %v165, 4294901760
      %1559 = vmatprep.subr.mxu0 %v1558
      %v1560 = vand.u32 %v164, 4294901760
      %1561 = vmatpush1.msra.mxu0 %v1560
      %v1562 = vand.u32 %v169, 4294901760
      %1563 = vmatprep.subr.mxu0 %v1562
      %v1564 = vand.u32 %v168, 4294901760
      %1565 = vmatpush1.msra.mxu0 %v1564
      %v1566 = vand.u32 %v173, 4294901760
      %1567 = vmatprep.subr.mxu0 %v1566
      %v1568 = vand.u32 %v172, 4294901760
      %1569 = vmatpush1.msra.mxu0 %v1568
      %v1570 = vand.u32 %v177, 4294901760
      %1571 = vmatprep.subr.mxu0 %v1570
      %v1572 = vand.u32 %v176, 4294901760
      %1573 = vmatpush1.msra.mxu0 %v1572
      %v1574 = vand.u32 %v181, 4294901760
      %1575 = vmatprep.subr.mxu0 %v1574
      %v1576 = vand.u32 %v180, 4294901760
      %1577 = vmatpush1.msra.mxu0 %v1576
      %v1578 = vand.u32 %v185, 4294901760
      %1579 = vmatprep.subr.mxu0 %v1578
      %v1580 = vand.u32 %v184, 4294901760
      %1581 = vmatpush1.msra.mxu0 %v1580
      %v1582 = vand.u32 %v189, 4294901760
      %1583 = vmatprep.subr.mxu0 %v1582
      %v1584 = vand.u32 %v188, 4294901760
      %1585 = vmatpush1.msra.mxu0 %v1584
      %v1586 = vand.u32 %v193, 4294901760
      %1587 = vmatprep.subr.mxu0 %v1586
      %v1588 = vand.u32 %v192, 4294901760
      %1589 = vmatpush1.msra.mxu0 %v1588
      %v1590 = vand.u32 %v197, 4294901760
      %1591 = vmatprep.subr.mxu0 %v1590
      %v1592 = vand.u32 %v196, 4294901760
      %1593 = vmatpush1.msra.mxu0 %v1592
      %v1594 = vand.u32 %v201, 4294901760
      %1595 = vmatprep.subr.mxu0 %v1594
      %v1596 = vand.u32 %v200, 4294901760
      %1597 = vmatpush1.msra.mxu0 %v1596
      %v1598 = vand.u32 %v205, 4294901760
      %1599 = vmatprep.subr.mxu0 %v1598
      %v1600 = vand.u32 %v204, 4294901760
      %1601 = vmatpush1.msra.mxu0 %v1600
      %1602 = vmatprep.subr.mxu0 0.0
      %1603 = vmatpush1.msra.mxu0 0.0
      %1604 = vmatprep.subr.mxu0 0.0
      %1605 = vmatpush1.msra.mxu0 0.0
      %1606 = vmatprep.subr.mxu0 0.0
      %1607 = vmatpush1.msra.mxu0 0.0
      %1608 = vmatprep.subr.mxu0 0.0
      %1609 = vmatpush1.msra.mxu0 0.0
      %1610 = vmatprep.subr.mxu0 0.0
      %1611 = vmatpush1.msra.mxu0 0.0
      %1612 = vmatprep.subr.mxu0 0.0
      %1613 = vmatpush1.msra.mxu0 0.0
      %1614 = vmatprep.subr.mxu0 0.0
      %1615 = vmatpush1.msra.mxu0 0.0
      %1616 = vmatprep.subr.mxu0 0.0
      %1617 = vmatpush1.msra.mxu0 0.0
      %1618 = vmatprep.subr.mxu0 0.0
      %1619 = vmatpush1.msra.mxu0 0.0
      %1620 = vmatprep.subr.mxu0 0.0
      %1621 = vmatpush1.msra.mxu0 0.0
      %1622 = vmatprep.subr.mxu0 0.0
      %1623 = vmatpush1.msra.mxu0 0.0
      %1624 = vmatprep.subr.mxu0 0.0
      %1625 = vmatpush1.msra.mxu0 0.0
      %1626 = vmatprep.subr.mxu0 0.0
      %1627 = vmatpush1.msra.mxu0 0.0
      %1628 = vmatprep.subr.mxu0 0.0
      %1629 = vmatpush1.msra.mxu0 0.0
      %1630 = vmatprep.subr.mxu0 0.0
      %1631 = vmatpush1.msra.mxu0 0.0
      %1632 = vmatprep.subr.mxu0 0.0
      %1633 = vmatpush1.msra.mxu0 0.0
      %1634 = vmatprep.mubr.f32.mxu0 0.0
      %v1635 = vand.u32 %v141, 4294901760
      %v1636 = vsub.f32 %v141, %v1635
      %v1637 = vand.u32 %v1636, 4294901760
      %1638 = vmatmul.mubr.f32.gmra.mrb[0].mxu0 %v1637
      %v1639 = vpop.f32.mrb[0].mxu0
      %v1640 = vadd.f32 %v1534, %v1639
      %v1641 = vpop.f32.mrb[0].mxu0
      %v1642 = vadd.f32 %v1536, %v1641
      %1643 = vdwg.mxu0
      %v1644 = vand.u32 %v145, 4294901760
      %v1645 = vsub.f32 %v145, %v1644
      %v1646 = vand.u32 %v1645, 4294901760
      %1647 = vmatprep.subr.mxu0 %v1646
      %v1648 = vand.u32 %v144, 4294901760
      %v1649 = vsub.f32 %v144, %v1648
      %v1650 = vand.u32 %v1649, 4294901760
      %1651 = vmatpush1.msra.mxu0 %v1650
      %v1652 = vand.u32 %v149, 4294901760
      %v1653 = vsub.f32 %v149, %v1652
      %v1654 = vand.u32 %v1653, 4294901760
      %1655 = vmatprep.subr.mxu0 %v1654
      %v1656 = vand.u32 %v148, 4294901760
      %v1657 = vsub.f32 %v148, %v1656
      %v1658 = vand.u32 %v1657, 4294901760
      %1659 = vmatpush1.msra.mxu0 %v1658
      %v1660 = vand.u32 %v153, 4294901760
      %v1661 = vsub.f32 %v153, %v1660
      %v1662 = vand.u32 %v1661, 4294901760
      %1663 = vmatprep.subr.mxu0 %v1662
      %v1664 = vand.u32 %v152, 4294901760
      %v1665 = vsub.f32 %v152, %v1664
      %v1666 = vand.u32 %v1665, 4294901760
      %1667 = vmatpush1.msra.mxu0 %v1666
      %v1668 = vand.u32 %v157, 4294901760
      %v1669 = vsub.f32 %v157, %v1668
      %v1670 = vand.u32 %v1669, 4294901760
      %1671 = vmatprep.subr.mxu0 %v1670
      %v1672 = vand.u32 %v156, 4294901760
      %v1673 = vsub.f32 %v156, %v1672
      %v1674 = vand.u32 %v1673, 4294901760
      %1675 = vmatpush1.msra.mxu0 %v1674
      %v1676 = vand.u32 %v161, 4294901760
      %v1677 = vsub.f32 %v161, %v1676
      %v1678 = vand.u32 %v1677, 4294901760
      %1679 = vmatprep.subr.mxu0 %v1678
      %v1680 = vand.u32 %v160, 4294901760
      %v1681 = vsub.f32 %v160, %v1680
      %v1682 = vand.u32 %v1681, 4294901760
      %1683 = vmatpush1.msra.mxu0 %v1682
      %v1684 = vand.u32 %v165, 4294901760
      %v1685 = vsub.f32 %v165, %v1684
      %v1686 = vand.u32 %v1685, 4294901760
      %1687 = vmatprep.subr.mxu0 %v1686
      %v1688 = vand.u32 %v164, 4294901760
      %v1689 = vsub.f32 %v164, %v1688
      %v1690 = vand.u32 %v1689, 4294901760
      %1691 = vmatpush1.msra.mxu0 %v1690
      %v1692 = vand.u32 %v169, 4294901760
      %v1693 = vsub.f32 %v169, %v1692
      %v1694 = vand.u32 %v1693, 4294901760
      %1695 = vmatprep.subr.mxu0 %v1694
      %v1696 = vand.u32 %v168, 4294901760
      %v1697 = vsub.f32 %v168, %v1696
      %v1698 = vand.u32 %v1697, 4294901760
      %1699 = vmatpush1.msra.mxu0 %v1698
      %v1700 = vand.u32 %v173, 4294901760
      %v1701 = vsub.f32 %v173, %v1700
      %v1702 = vand.u32 %v1701, 4294901760
      %1703 = vmatprep.subr.mxu0 %v1702
      %v1704 = vand.u32 %v172, 4294901760
      %v1705 = vsub.f32 %v172, %v1704
      %v1706 = vand.u32 %v1705, 4294901760
      %1707 = vmatpush1.msra.mxu0 %v1706
      %v1708 = vand.u32 %v177, 4294901760
      %v1709 = vsub.f32 %v177, %v1708
      %v1710 = vand.u32 %v1709, 4294901760
      %1711 = vmatprep.subr.mxu0 %v1710
      %v1712 = vand.u32 %v176, 4294901760
      %v1713 = vsub.f32 %v176, %v1712
      %v1714 = vand.u32 %v1713, 4294901760
      %1715 = vmatpush1.msra.mxu0 %v1714
      %v1716 = vand.u32 %v181, 4294901760
      %v1717 = vsub.f32 %v181, %v1716
      %v1718 = vand.u32 %v1717, 4294901760
      %1719 = vmatprep.subr.mxu0 %v1718
      %v1720 = vand.u32 %v180, 4294901760
      %v1721 = vsub.f32 %v180, %v1720
      %v1722 = vand.u32 %v1721, 4294901760
      %1723 = vmatpush1.msra.mxu0 %v1722
      %v1724 = vand.u32 %v185, 4294901760
      %v1725 = vsub.f32 %v185, %v1724
      %v1726 = vand.u32 %v1725, 4294901760
      %1727 = vmatprep.subr.mxu0 %v1726
      %v1728 = vand.u32 %v184, 4294901760
      %v1729 = vsub.f32 %v184, %v1728
      %v1730 = vand.u32 %v1729, 4294901760
      %1731 = vmatpush1.msra.mxu0 %v1730
      %v1732 = vand.u32 %v189, 4294901760
      %v1733 = vsub.f32 %v189, %v1732
      %v1734 = vand.u32 %v1733, 4294901760
      %1735 = vmatprep.subr.mxu0 %v1734
      %v1736 = vand.u32 %v188, 4294901760
      %v1737 = vsub.f32 %v188, %v1736
      %v1738 = vand.u32 %v1737, 4294901760
      %1739 = vmatpush1.msra.mxu0 %v1738
      %v1740 = vand.u32 %v193, 4294901760
      %v1741 = vsub.f32 %v193, %v1740
      %v1742 = vand.u32 %v1741, 4294901760
      %1743 = vmatprep.subr.mxu0 %v1742
      %v1744 = vand.u32 %v192, 4294901760
      %v1745 = vsub.f32 %v192, %v1744
      %v1746 = vand.u32 %v1745, 4294901760
      %1747 = vmatpush1.msra.mxu0 %v1746
      %v1748 = vand.u32 %v197, 4294901760
      %v1749 = vsub.f32 %v197, %v1748
      %v1750 = vand.u32 %v1749, 4294901760
      %1751 = vmatprep.subr.mxu0 %v1750
      %v1752 = vand.u32 %v196, 4294901760
      %v1753 = vsub.f32 %v196, %v1752
      %v1754 = vand.u32 %v1753, 4294901760
      %1755 = vmatpush1.msra.mxu0 %v1754
      %v1756 = vand.u32 %v201, 4294901760
      %v1757 = vsub.f32 %v201, %v1756
      %v1758 = vand.u32 %v1757, 4294901760
      %1759 = vmatprep.subr.mxu0 %v1758
      %v1760 = vand.u32 %v200, 4294901760
      %v1761 = vsub.f32 %v200, %v1760
      %v1762 = vand.u32 %v1761, 4294901760
      %1763 = vmatpush1.msra.mxu0 %v1762
      %v1764 = vand.u32 %v205, 4294901760
      %v1765 = vsub.f32 %v205, %v1764
      %v1766 = vand.u32 %v1765, 4294901760
      %1767 = vmatprep.subr.mxu0 %v1766
      %v1768 = vand.u32 %v204, 4294901760
      %v1769 = vsub.f32 %v204, %v1768
      %v1770 = vand.u32 %v1769, 4294901760
      %1771 = vmatpush1.msra.mxu0 %v1770
      %1772 = vmatprep.subr.mxu0 0.0
      %1773 = vmatpush1.msra.mxu0 0.0
      %1774 = vmatprep.subr.mxu0 0.0
      %1775 = vmatpush1.msra.mxu0 0.0
      %1776 = vmatprep.subr.mxu0 0.0
      %1777 = vmatpush1.msra.mxu0 0.0
      %1778 = vmatprep.subr.mxu0 0.0
      %1779 = vmatpush1.msra.mxu0 0.0
      %1780 = vmatprep.subr.mxu0 0.0
      %1781 = vmatpush1.msra.mxu0 0.0
      %1782 = vmatprep.subr.mxu0 0.0
      %1783 = vmatpush1.msra.mxu0 0.0
      %1784 = vmatprep.subr.mxu0 0.0
      %1785 = vmatpush1.msra.mxu0 0.0
      %1786 = vmatprep.subr.mxu0 0.0
      %1787 = vmatpush1.msra.mxu0 0.0
      %1788 = vmatprep.subr.mxu0 0.0
      %1789 = vmatpush1.msra.mxu0 0.0
      %1790 = vmatprep.subr.mxu0 0.0
      %1791 = vmatpush1.msra.mxu0 0.0
      %1792 = vmatprep.subr.mxu0 0.0
      %1793 = vmatpush1.msra.mxu0 0.0
      %1794 = vmatprep.subr.mxu0 0.0
      %1795 = vmatpush1.msra.mxu0 0.0
      %1796 = vmatprep.subr.mxu0 0.0
      %1797 = vmatpush1.msra.mxu0 0.0
      %1798 = vmatprep.subr.mxu0 0.0
      %1799 = vmatpush1.msra.mxu0 0.0
      %1800 = vmatprep.subr.mxu0 0.0
      %1801 = vmatpush1.msra.mxu0 0.0
      %1802 = vmatprep.subr.mxu0 0.0
      %1803 = vmatpush1.msra.mxu0 0.0
      %1804 = vmatprep.mubr.f32.mxu0 0.0
      %v1805 = vand.u32 %v141, 4294901760
      %1806 = vmatmul.mubr.f32.gmra.mrb[0].mxu0 %v1805
      %v1807 = vpop.f32.mrb[0].mxu0
      %v1808 = vadd.f32 %v1640, %v1807
      %v1809 = vpop.f32.mrb[0].mxu0
      %v1810 = vadd.f32 %v1642, %v1809
      %1811 = vdwg.mxu0
      %v1812 = vand.u32 %v145, 4294901760
      %1813 = vmatprep.subr.mxu0 %v1812
      %v1814 = vand.u32 %v144, 4294901760
      %1815 = vmatpush1.msra.mxu0 %v1814
      %v1816 = vand.u32 %v149, 4294901760
      %1817 = vmatprep.subr.mxu0 %v1816
      %v1818 = vand.u32 %v148, 4294901760
      %1819 = vmatpush1.msra.mxu0 %v1818
      %v1820 = vand.u32 %v153, 4294901760
      %1821 = vmatprep.subr.mxu0 %v1820
      %v1822 = vand.u32 %v152, 4294901760
      %1823 = vmatpush1.msra.mxu0 %v1822
      %v1824 = vand.u32 %v157, 4294901760
      %1825 = vmatprep.subr.mxu0 %v1824
      %v1826 = vand.u32 %v156, 4294901760
      %1827 = vmatpush1.msra.mxu0 %v1826
      %v1828 = vand.u32 %v161, 4294901760
      %1829 = vmatprep.subr.mxu0 %v1828
      %v1830 = vand.u32 %v160, 4294901760
      %1831 = vmatpush1.msra.mxu0 %v1830
      %v1832 = vand.u32 %v165, 4294901760
      %1833 = vmatprep.subr.mxu0 %v1832
      %v1834 = vand.u32 %v164, 4294901760
      %1835 = vmatpush1.msra.mxu0 %v1834
      %v1836 = vand.u32 %v169, 4294901760
      %1837 = vmatprep.subr.mxu0 %v1836
      %v1838 = vand.u32 %v168, 4294901760
      %1839 = vmatpush1.msra.mxu0 %v1838
      %v1840 = vand.u32 %v173, 4294901760
      %1841 = vmatprep.subr.mxu0 %v1840
      %v1842 = vand.u32 %v172, 4294901760
      %1843 = vmatpush1.msra.mxu0 %v1842
      %v1844 = vand.u32 %v177, 4294901760
      %1845 = vmatprep.subr.mxu0 %v1844
      %v1846 = vand.u32 %v176, 4294901760
      %1847 = vmatpush1.msra.mxu0 %v1846
      %v1848 = vand.u32 %v181, 4294901760
      %1849 = vmatprep.subr.mxu0 %v1848
      %v1850 = vand.u32 %v180, 4294901760
      %1851 = vmatpush1.msra.mxu0 %v1850
      %v1852 = vand.u32 %v185, 4294901760
      %1853 = vmatprep.subr.mxu0 %v1852
      %v1854 = vand.u32 %v184, 4294901760
      %1855 = vmatpush1.msra.mxu0 %v1854
      %v1856 = vand.u32 %v189, 4294901760
      %1857 = vmatprep.subr.mxu0 %v1856
      %v1858 = vand.u32 %v188, 4294901760
      %1859 = vmatpush1.msra.mxu0 %v1858
      %v1860 = vand.u32 %v193, 4294901760
      %1861 = vmatprep.subr.mxu0 %v1860
      %v1862 = vand.u32 %v192, 4294901760
      %1863 = vmatpush1.msra.mxu0 %v1862
      %v1864 = vand.u32 %v197, 4294901760
      %1865 = vmatprep.subr.mxu0 %v1864
      %v1866 = vand.u32 %v196, 4294901760
      %1867 = vmatpush1.msra.mxu0 %v1866
      %v1868 = vand.u32 %v201, 4294901760
      %1869 = vmatprep.subr.mxu0 %v1868
      %v1870 = vand.u32 %v200, 4294901760
      %1871 = vmatpush1.msra.mxu0 %v1870
      %v1872 = vand.u32 %v205, 4294901760
      %1873 = vmatprep.subr.mxu0 %v1872
      %v1874 = vand.u32 %v204, 4294901760
      %1875 = vmatpush1.msra.mxu0 %v1874
      %1876 = vmatprep.subr.mxu0 0.0
      %1877 = vmatpush1.msra.mxu0 0.0
      %1878 = vmatprep.subr.mxu0 0.0
      %1879 = vmatpush1.msra.mxu0 0.0
      %1880 = vmatprep.subr.mxu0 0.0
      %1881 = vmatpush1.msra.mxu0 0.0
      %1882 = vmatprep.subr.mxu0 0.0
      %1883 = vmatpush1.msra.mxu0 0.0
      %1884 = vmatprep.subr.mxu0 0.0
      %1885 = vmatpush1.msra.mxu0 0.0
      %1886 = vmatprep.subr.mxu0 0.0
      %1887 = vmatpush1.msra.mxu0 0.0
      %1888 = vmatprep.subr.mxu0 0.0
      %1889 = vmatpush1.msra.mxu0 0.0
      %1890 = vmatprep.subr.mxu0 0.0
      %1891 = vmatpush1.msra.mxu0 0.0
      %1892 = vmatprep.subr.mxu0 0.0
      %1893 = vmatpush1.msra.mxu0 0.0
      %1894 = vmatprep.subr.mxu0 0.0
      %1895 = vmatpush1.msra.mxu0 0.0
      %1896 = vmatprep.subr.mxu0 0.0
      %1897 = vmatpush1.msra.mxu0 0.0
      %1898 = vmatprep.subr.mxu0 0.0
      %1899 = vmatpush1.msra.mxu0 0.0
      %1900 = vmatprep.subr.mxu0 0.0
      %1901 = vmatpush1.msra.mxu0 0.0
      %1902 = vmatprep.subr.mxu0 0.0
      %1903 = vmatpush1.msra.mxu0 0.0
      %1904 = vmatprep.subr.mxu0 0.0
      %1905 = vmatpush1.msra.mxu0 0.0
      %1906 = vmatprep.subr.mxu0 0.0
      %1907 = vmatpush1.msra.mxu0 0.0
      %1908 = vmatprep.mubr.f32.mxu0 0.0
      %v1909 = vand.u32 %v141, 4294901760
      %1910 = vmatmul.mubr.f32.gmra.mrb[0].mxu0 %v1909
      %v1911 = vpop.f32.mrb[0].mxu0
      %v1912 = vadd.f32 %v1808, %v1911
      %v1913 = vpop.f32.mrb[0].mxu0
      %v1914 = vadd.f32 %v1810, %v1913
      %1915 = vdwg.mxu0
      %1916 = vst [vmem:[%s140] sm:$0xff] %v1057
      %1917 = vst [vmem:[%s140 + $0x8] sm:$0xff] %v1059
      %1918 = vst [vmem:[%s140 + $0x10] sm:$0xff] %v1912
      %1919 = vst [vmem:[%s140 + $0x18] sm:$0xff] %v1914
      %p1920 = scmp.lt.s32.totalorder %s13, 1
      %s1921 = scalar_select %p1920, %s13, 1
      %s1922 = smul.addr %s1921, 4
      %s1923 = smul.addr %s1922, 8
      %s1924 = scalar_lea.vmem %s2, %s1923
      // Predicated region
      $region29: #{upblock_forward.1} parent=27 // pred_check
        %p1925 = pneg %p78
      $region30: #{upblock_forward.1} parent=27 // pred_check_branch
        %1927 = sbr.rel (%p1925) target = $region32
      $region31: #{upblock_forward.1} parent=27 // pred_region
        _
      $region32: #{upblock_forward.1} parent=27 // pred_fallthru
        _
    $region28: #{upblock_forward.1} parent=5 // pred_fallthru
      _
    %p1928 = scmp.le.s32.totalorder 2, %s8
    // Predicated region
    $region33: #{upblock_forward.1} parent=5 // pred_check
      %p1929 = pneg %p1928
    $region34: #{upblock_forward.1} parent=5 // pred_check_branch
      %1931 = sbr.rel (%p1929) target = $region36
    $region35: #{upblock_forward.1} parent=5 // pred_region
      %s1932 = ssub.s32 %s8, 2
      // Predicated region
      $region37: #{upblock_forward.1} parent=35 // pred_check
        %p1933 = pneg %p84
      $region38: #{upblock_forward.1} parent=35 // pred_check_branch
        %1935 = sbr.rel (%p1933) target = $region40
      $region39: #{upblock_forward.1} parent=35 // pred_region
        %p1936 = scmp.lt.s32.totalorder %s14, 1
        %s1937 = scalar_select %p1936, %s14, 1
        %s1938 = smul.addr %s1937, 4
        %s1939 = smul.addr %s1938, 8
        %s1940 = scalar_lea.vmem %s2, %s1939
      $region40: #{upblock_forward.1} parent=35 // pred_fallthru
        _
    $region36: #{upblock_forward.1} parent=5 // pred_fallthru
      _
  $region6: #{upblock_forward.1} parent=0 // loop_footer
    %s12 = sadd.s32 1, %s8
  $region7: #{upblock_forward.1} parent=0 // loop_footer_branch
    %7 = sbr.rel target = $region3
  $region8: #{upblock_forward.1} parent=0 // loop_exit
    _

</llo_original>
